<compile_context>
chip_gen: v5e
topology: v5e:2x2
jax: 0.10.0
libtpu: 0.0.40
codegen_flags: <defaults>
</compile_context>

<pallas_src>
import functools

import jax
import jax.numpy as jnp
from jax.experimental import pallas as pl
from jax.experimental.pallas import tpu as pltpu


def _convlstm_gates_kernel(p_ref, w_ref, b_ref, c_ref, h_out_ref, c_out_ref,
                           *, hidden_dim):
    """One M-block (rows of flattened B*H*W) per grid step.

    p_ref     : (Mb, K)        bf16 im2col patches, K = KH*KW*(Cin+hid)
    w_ref     : (K, 4*hid)     bf16 conv weights in matmul form
    b_ref     : (1, 4*hid)     f32 conv bias
    c_ref     : (Mb, hid)      current cell state (f32)
    h_out_ref : (Mb, hid)
    c_out_ref : (Mb, hid)
    """
    hid = hidden_dim

    # Single K-fused matmul on the MXU, f32 accumulation.
    acc = jnp.dot(p_ref[...], w_ref[...], preferred_element_type=jnp.float32)
    acc = acc + b_ref[...]                                   # (Mb, 4*hid)

    # Full-lane-width activation with ONE transcendental pass:
    #   lanes [0, 3*hid)  -> sigmoid(x) = 0.5*(1 + tanh(0.5*x))
    #   lanes [3*hid, 4h) -> tanh(x)
    lane = jax.lax.broadcasted_iota(jnp.int32, acc.shape, 1)
    is_sig = lane < 3 * hid
    scale = jnp.where(is_sig, jnp.float32(0.5), jnp.float32(1.0))
    t = jnp.tanh(acc * scale)                                # single EUP pass
    gates = t * scale + jnp.where(is_sig, jnp.float32(0.5), jnp.float32(0.0))

    # Cheap narrow (static) slices only for the final elementwise multiplies.
    i_g = gates[:, 0 * hid:1 * hid]
    f_g = gates[:, 1 * hid:2 * hid]
    o_g = gates[:, 2 * hid:3 * hid]
    g_t = gates[:, 3 * hid:4 * hid]

    c_cur = c_ref[...].astype(jnp.float32)
    c_next = f_g * c_cur + i_g * g_t
    h_next = o_g * jnp.tanh(c_next)

    c_out_ref[...] = c_next.astype(c_out_ref.dtype)
    h_out_ref[...] = h_next.astype(h_out_ref.dtype)


def _pick_m_block(m, target=256):
    """Largest divisor of m that is a multiple of 8 and <= target."""
    mb = min(target, m)
    mb -= mb % 8
    while mb >= 8:
        if m % mb == 0:
            return mb
        mb -= 8
    return m  # fallback: single block covering everything


def convlstm_cell_forward(x_nchw, h_nchw, c_nchw, weight, bias, kernel_size):
    """ConvLSTMCell.forward.

    x_nchw : (B, input_dim, H, W)
    h_nchw : (B, hidden_dim, H, W)
    c_nchw : (B, hidden_dim, H, W)
    weight : (4*hidden_dim, input_dim+hidden_dim, KH, KW)   (PyTorch Conv2d layout)
    bias   : (4*hidden_dim,)
    Returns (h_next, c_next) in NCHW.
    """
    kh, kw = kernel_size
    pad_h, pad_w = kh // 2, kw // 2
    B, cin, H, W = x_nchw.shape
    hid = h_nchw.shape[1]
    ctot = cin + hid
    four_hid = 4 * hid
    K = kh * kw * ctot
    M = B * H * W

    # ---- glue (plain JAX): layout, concat, pad, im2col patch build ----
    # TODO(synk): for a sequence loop, keep h/c in the flattened (M, hid)
    # layout across timesteps to avoid per-step NCHW<->NHWC round trips.
    x = jnp.transpose(x_nchw, (0, 2, 3, 1))                   # (B, H, W, Cin)
    h = jnp.transpose(h_nchw, (0, 2, 3, 1))                   # (B, H, W, hid)
    comb = jnp.concatenate([x, h], axis=-1)                   # (B, H, W, Ctot)
    comb = jnp.pad(comb, ((0, 0), (pad_h, pad_h), (pad_w, pad_w), (0, 0)))

    taps = [comb[:, dh:dh + H, dw:dw + W, :]
            for dh in range(kh) for dw in range(kw)]
    patches = jnp.concatenate(taps, axis=-1)                  # (B, H, W, K)
    patches = patches.reshape(M, K).astype(jnp.bfloat16)

    # weight (4*hid, Ctot, KH, KW) -> (KH*KW*Ctot, 4*hid); (dh, dw, channel)
    # ordering matches the patch concat order above.
    w_mat = jnp.transpose(weight, (2, 3, 1, 0)).reshape(K, four_hid)
    w_mat = w_mat.astype(jnp.bfloat16)
    b_row = bias.reshape(1, four_hid).astype(jnp.float32)

    c_flat = jnp.transpose(c_nchw, (0, 2, 3, 1)).reshape(M, hid)
    c_flat = c_flat.astype(jnp.float32)

    mb = _pick_m_block(M)
    grid = (M // mb,)

    kernel = functools.partial(_convlstm_gates_kernel, hidden_dim=hid)

    h_next, c_next = pl.pallas_call(
        kernel,
        out_shape=(jax.ShapeDtypeStruct((M, hid), x_nchw.dtype),
                   jax.ShapeDtypeStruct((M, hid), x_nchw.dtype)),
        grid_spec=pltpu.PrefetchScalarGridSpec(
            num_scalar_prefetch=0,
            grid=grid,
            in_specs=[
                pl.BlockSpec((mb, K), lambda m: (m, 0)),            # patches
                pl.BlockSpec((K, four_hid), lambda m: (0, 0)),      # weights
                pl.BlockSpec((1, four_hid), lambda m: (0, 0)),      # bias
                pl.BlockSpec((mb, hid), lambda m: (m, 0)),          # c state
            ],
            out_specs=[
                pl.BlockSpec((mb, hid), lambda m: (m, 0)),
                pl.BlockSpec((mb, hid), lambda m: (m, 0)),
            ],
        ),
        compiler_params=pltpu.CompilerParams(
            dimension_semantics=("parallel",)),
    )(patches, w_mat, b_row, c_flat)

    # back to NCHW
    h_next = jnp.transpose(h_next.reshape(B, H, W, hid), (0, 3, 1, 2))
    c_next = jnp.transpose(c_next.reshape(B, H, W, hid), (0, 3, 1, 2))
    return h_next, c_next


def _reference_forward(x, h, c, weight, bias, kernel_size):
    """Pure-JAX f32 reference (mirrors the PyTorch module) for validation."""
    kh, kw = kernel_size
    combined = jnp.concatenate([x, h], axis=1)  # NCHW
    conv = jax.lax.conv_general_dilated(
        combined, weight, window_strides=(1, 1),
        padding=((kh // 2, kh // 2), (kw // 2, kw // 2)),
        dimension_numbers=("NCHW", "OIHW", "NCHW"))
    conv = conv + bias.reshape(1, -1, 1, 1)
    cc_i, cc_f, cc_o, cc_g = jnp.split(conv, 4, axis=1)
    i = jax.nn.sigmoid(cc_i)
    f = jax.nn.sigmoid(cc_f)
    o = jax.nn.sigmoid(cc_o)
    g = jnp.tanh(cc_g)
    c_next = f * c + i * g
    h_next = o * jnp.tanh(c_next)
    return h_next, c_next


if __name__ == "__main__":
    # Small shapes consistent with the module's forward().
    B, input_dim, hidden_dim = 2, 4, 32
    H = W = 16
    kernel_size = (3, 3)

    key = jax.random.PRNGKey(0)
    kx, kh, kc, kw_, kb = jax.random.split(key, 5)

    x = jax.random.normal(kx, (B, input_dim, H, W), dtype=jnp.float32)
    h0 = jax.random.normal(kh, (B, hidden_dim, H, W), dtype=jnp.float32)
    c0 = jax.random.normal(kc, (B, hidden_dim, H, W), dtype=jnp.float32)

    # Deterministic synthetic conv parameters (shapes from nn.Conv2d in __init__).
    weight = 0.05 * jax.random.normal(
        kw_, (4 * hidden_dim, input_dim + hidden_dim, *kernel_size),
        dtype=jnp.float32)
    bias = 0.05 * jax.random.normal(kb, (4 * hidden_dim,), dtype=jnp.float32)

    h_next, c_next = jax.jit(
        functools.partial(convlstm_cell_forward, kernel_size=kernel_size)
    )(x, h0, c0, weight, bias)
    jax.block_until_ready((h_next, c_next))

    h_ref, c_ref = _reference_forward(x, h0, c0, weight, bias, kernel_size)
    # bf16 matmul operands (f32 accumulation / gate math) => looser tolerance.
    assert jnp.allclose(h_next, h_ref, atol=3e-2, rtol=3e-2), "h_next mismatch"
    assert jnp.allclose(c_next, c_ref, atol=3e-2, rtol=3e-2), "c_next mismatch"

    print("KERNEL_OK")
</pallas_src>

<mosaic_0001>
module attributes {stable_mosaic.version = 11 : i64} {
  func.func @_convlstm_gates_kernel(%arg0: i32, %arg1: memref<256x324xbf16, #tpu.memory_space<vmem>>, %arg2: memref<324x128xbf16, #tpu.memory_space<vmem>>, %arg3: memref<1x128xf32, #tpu.memory_space<vmem>>, %arg4: memref<256x32xf32, #tpu.memory_space<vmem>>, %arg5: memref<256x32xf32, #tpu.memory_space<vmem>>, %arg6: memref<256x32xf32, #tpu.memory_space<vmem>>) attributes {dimension_semantics = [#tpu.dimension_semantics<parallel>], iteration_bounds = array<i64: 2>, scalar_prefetch = 0 : i64, scratch_operands = 0 : i64, tpu.core_type = #tpu.core_type<tc>, window_params = [{transform_indices = @transform_0, window_bounds = array<i64: 256, 324>}, {pipeline_mode = #tpu.pipeline_mode<synchronous>, transform_indices = @transform_1, window_bounds = array<i64: 324, 128>}, {pipeline_mode = #tpu.pipeline_mode<synchronous>, transform_indices = @transform_2, window_bounds = array<i64: 1, 128>}, {transform_indices = @transform_3, window_bounds = array<i64: 256, 32>}, {transform_indices = @transform_4, window_bounds = array<i64: 256, 32>}, {transform_indices = @transform_5, window_bounds = array<i64: 256, 32>}]} {
    %c0 = arith.constant 0 : index
    %c0_0 = arith.constant 0 : index
    %0 = vector.load %arg1[%c0, %c0_0] : memref<256x324xbf16, #tpu.memory_space<vmem>>, vector<256x324xbf16>
    %c0_1 = arith.constant 0 : index
    %c0_2 = arith.constant 0 : index
    %1 = vector.load %arg2[%c0_1, %c0_2] : memref<324x128xbf16, #tpu.memory_space<vmem>>, vector<324x128xbf16>
    %cst = arith.constant dense<0.000000e+00> : vector<256x128xf32>
    %2 = tpu.matmul %0, %1, %cst {dimension_numbers = #tpu.dot_dimension_numbers<[1], [0], [0], [1], [0, 0, 1, 1], [], []>} : vector<256x324xbf16>, vector<324x128xbf16>, vector<256x128xf32> -> vector<256x128xf32>
    %c0_3 = arith.constant 0 : index
    %c0_4 = arith.constant 0 : index
    %3 = vector.load %arg3[%c0_3, %c0_4] : memref<1x128xf32, #tpu.memory_space<vmem>>, vector<1x128xf32>
    %4 = vector.broadcast %3 : vector<1x128xf32> to vector<256x128xf32>
    %5 = arith.addf %2, %4 : vector<256x128xf32>
    %6 = tpu.iota {dimensions = array<i32: 1>} : vector<256x128xi32>
    %c96_i32 = arith.constant 96 : i32
    %7 = vector.broadcast %c96_i32 : i32 to vector<256x128xi32>
    %8 = arith.cmpi slt, %6, %7 : vector<256x128xi32>
    %cst_5 = arith.constant 5.000000e-01 : f32
    %cst_6 = arith.constant 1.000000e+00 : f32
    %9 = vector.broadcast %cst_5 : f32 to vector<256x128xf32>
    %10 = vector.broadcast %cst_6 : f32 to vector<256x128xf32>
    %11 = arith.select %8, %9, %10 : vector<256x128xi1>, vector<256x128xf32>
    %12 = arith.mulf %5, %11 : vector<256x128xf32>
    %13 = math.tanh %12 : vector<256x128xf32>
    %14 = arith.mulf %13, %11 : vector<256x128xf32>
    %cst_7 = arith.constant 5.000000e-01 : f32
    %cst_8 = arith.constant 0.000000e+00 : f32
    %15 = vector.broadcast %cst_7 : f32 to vector<256x128xf32>
    %16 = vector.broadcast %cst_8 : f32 to vector<256x128xf32>
    %17 = arith.select %8, %15, %16 : vector<256x128xi1>, vector<256x128xf32>
    %18 = arith.addf %14, %17 : vector<256x128xf32>
    %19 = vector.extract_strided_slice %18 {offsets = [0, 0], sizes = [256, 32], strides = [1, 1]} : vector<256x128xf32> to vector<256x32xf32>
    %20 = vector.extract_strided_slice %18 {offsets = [0, 32], sizes = [256, 32], strides = [1, 1]} : vector<256x128xf32> to vector<256x32xf32>
    %21 = vector.extract_strided_slice %18 {offsets = [0, 64], sizes = [256, 32], strides = [1, 1]} : vector<256x128xf32> to vector<256x32xf32>
    %22 = vector.extract_strided_slice %18 {offsets = [0, 96], sizes = [256, 32], strides = [1, 1]} : vector<256x128xf32> to vector<256x32xf32>
    %c0_9 = arith.constant 0 : index
    %c0_10 = arith.constant 0 : index
    %23 = vector.load %arg4[%c0_9, %c0_10] : memref<256x32xf32, #tpu.memory_space<vmem>>, vector<256x32xf32>
    %24 = arith.mulf %20, %23 : vector<256x32xf32>
    %25 = arith.mulf %19, %22 : vector<256x32xf32>
    %26 = arith.addf %24, %25 : vector<256x32xf32>
    %27 = math.tanh %26 : vector<256x32xf32>
    %28 = arith.mulf %21, %27 : vector<256x32xf32>
    %c0_11 = arith.constant 0 : index
    %c0_12 = arith.constant 0 : index
    %29 = vector.load %arg6[%c0_11, %c0_12] : memref<256x32xf32, #tpu.memory_space<vmem>>, vector<256x32xf32>
    tpu.vector_store %arg6[%c0_11, %c0_12], %26 {strides = array<i32>} : memref<256x32xf32, #tpu.memory_space<vmem>>, vector<256x32xf32>,
    %c0_13 = arith.constant 0 : index
    %c0_14 = arith.constant 0 : index
    %30 = vector.load %arg5[%c0_13, %c0_14] : memref<256x32xf32, #tpu.memory_space<vmem>>, vector<256x32xf32>
    tpu.vector_store %arg5[%c0_13, %c0_14], %28 {strides = array<i32>} : memref<256x32xf32, #tpu.memory_space<vmem>>, vector<256x32xf32>,
    return
  }
  func.func @transform_0(%arg0: i32) -> (i32, i32) {
    %c0_i32 = arith.constant 0 : i32
    %c0_i32_0 = arith.constant 0 : i32
    return %arg0, %c0_i32 : i32, i32
  }
  func.func @transform_1(%arg0: i32) -> (i32, i32) {
    %c0_i32 = arith.constant 0 : i32
    %c0_i32_0 = arith.constant 0 : i32
    %c0_i32_1 = arith.constant 0 : i32
    return %c0_i32, %c0_i32_0 : i32, i32
  }
  func.func @transform_2(%arg0: i32) -> (i32, i32) {
    %c0_i32 = arith.constant 0 : i32
    %c0_i32_0 = arith.constant 0 : i32
    %c0_i32_1 = arith.constant 0 : i32
    return %c0_i32, %c0_i32_0 : i32, i32
  }
  func.func @transform_3(%arg0: i32) -> (i32, i32) {
    %c0_i32 = arith.constant 0 : i32
    %c0_i32_0 = arith.constant 0 : i32
    return %arg0, %c0_i32 : i32, i32
  }
  func.func @transform_4(%arg0: i32) -> (i32, i32) {
    %c0_i32 = arith.constant 0 : i32
    %c0_i32_0 = arith.constant 0 : i32
    return %arg0, %c0_i32 : i32, i32
  }
  func.func @transform_5(%arg0: i32) -> (i32, i32) {
    %c0_i32 = arith.constant 0 : i32
    %c0_i32_0 = arith.constant 0 : i32
    return %arg0, %c0_i32 : i32, i32
  }
}

</mosaic_0001>

<llo_original>
// kernel: convlstm_cell_forward.1
$region0: #{convlstm_cell_forward.1}
  #allocation0 [shape = 'u32[]', space=smem, size = 0x4, offset = 0x4, fixed_abs, tag = 'smem constant byte address 0x4 - core index']
  #allocation1 [shape = 'u32[72,128]{1,0:T(1,128)}', space=vmem, size = 0x9000, scoped, tag = 'internal scratch']
  %s0 = inlined_call_operand.vmem [shape: bf16[512,324], index: 0, kind: input, shape index: {}]
  %s1 = inlined_call_operand.vmem [shape: bf16[324,128], index: 1, kind: input, shape index: {}]
  %s2 = inlined_call_operand.vmem [shape: f32[1,128], index: 2, kind: input, shape index: {}]
  %s3 = inlined_call_operand.vmem [shape: f32[512,32], index: 3, kind: input, shape index: {}]
  %s4 = inlined_call_operand.hbm [shape: f32[512,32], index: 4, kind: output, shape index: {0}]
  %s5 = inlined_call_operand.hbm [shape: f32[512,32], index: 5, kind: output, shape index: {1}]
  %6 = xla_tuple %s4, %s5
  %s7 = sld [smem:[#allocation0]]
  $region57: #{convlstm_cell_forward.1} parent=0
    _
  %s9 = ssub.s32 1, %s7
  %s10 = scalar_select 0, %s9, %s7
  $region1: #{convlstm_cell_forward.1} parent=0
    #allocation2 [shape = 'u8[262144]{0}', space=vmem, size = 0x40000, scoped, tag = 'output window, operand 0']
    #allocation3 [shape = 's32[2]{0}', space=sflag, size = 0x8, scoped, tag = 'scoped memory for convlstm_cell_forward.1']
    #allocation4 [shape = 'u8[262144]{0}', space=vmem, size = 0x40000, scoped, tag = 'output window, operand 1']
    #allocation5 [shape = 's32[2]{0}', space=sflag, size = 0x8, scoped, tag = 'scoped memory for convlstm_cell_forward.1']
    %11 = vsyncpa [#allocation3], 0
    %s12 = scalar_lea.sflag [#allocation3], 1
    %13 = vsyncpa %s12, 0
    %14 = vsyncpa [#allocation5], 0
    %s15 = scalar_lea.sflag [#allocation5], 1
    %16 = vsyncpa %s15, 0
    loop: start=0, step=1, limit=4
    $region2: #{convlstm_cell_forward.1} parent=1 // loop_pre_header
      _
    $region3: #{convlstm_cell_forward.1} parent=1 // loop_header
      %s18 = sphi 0, %s22
      %p19 = scmp.ge.s32.totalorder %s18, 4
      %s28 = sphi 0, %s30
      %s31 = sphi 0, %s28
      %s32 = sphi 0, %s31
      %s48 = sphi 0, %s32
      %s52 = sphi 0, %s52
      %s54 = sphi 0, %s52
      %s55 = sphi 0, %s54
      %s69 = sphi 0, %s55
      %s73 = sphi 0, %s73
      %s75 = sphi 0, %s73
      %s76 = sphi 0, %s75
      %s90 = sphi 0, %s76
      %s96 = sphi 0, %s98
      %s99 = sphi 0, %s96
      %s100 = sphi 0, %s99
      %s116 = sphi 0, %s100
      %s122 = sphi 0, %s124
      %s125 = sphi 0, %s122
      %s126 = sphi 0, %s125
      %s142 = sphi 0, %s126
      %s148 = sphi 0, %s150
      %s151 = sphi 0, %s148
      %s152 = sphi 0, %s151
      %s168 = sphi 0, %s152
    $region4: #{convlstm_cell_forward.1} parent=1 // loop_header_branch
      %21 = sbr.rel (%p19) target = $region8
    $region5: #{convlstm_cell_forward.1} parent=1 // loop_body
      %s23 = ssub.s32 %s18, 1
      %s24 = ssub.s32 %s18, 2
      %s25 = sadd.s32 %s18, 1
      %s26 = ssub.s32 %s18, %s25
      %p27 = scmp.eq.s32.totalorder %s26, 0
      %s29 = sadd.s32 %s28, 1
      %s30 = scalar_select %p27, %s28, %s29
      %p33 = pneg %p27
      %p34 = scmp.eq.s32.totalorder %s18, 1
      %p35 = por %p33, %p34
      %p36 = scmp.ne.s32.totalorder %s28, %s31
      %p37 = scmp.eq.s32.totalorder %s18, 0
      %p38 = por %p36, %p37
      %p39 = scmp.ne.s32.totalorder %s28, %s31
      %p40 = scmp.eq.s32.totalorder %s23, 1
      %p41 = por %p39, %p40
      %p42 = scmp.ne.s32.totalorder %s31, %s32
      %p43 = scmp.eq.s32.totalorder %s23, 0
      %p44 = por %p42, %p43
      %p45 = scmp.ne.s32.totalorder %s31, %s32
      %p46 = scmp.eq.s32.totalorder %s24, 1
      %p47 = por %p45, %p46
      %p49 = scmp.ne.s32.totalorder %s32, %s48
      %p50 = scmp.eq.s32.totalorder %s24, 0
      %p51 = por %p49, %p50
      %s53 = sadd.s32 %s52, 1
      %p56 = scmp.eq.s32.totalorder %s18, 1
      %p57 = scmp.ne.s32.totalorder %s52, %s54
      %p58 = scmp.eq.s32.totalorder %s18, 0
      %p59 = por %p57, %p58
      %p60 = scmp.ne.s32.totalorder %s52, %s54
      %p61 = scmp.eq.s32.totalorder %s23, 1
      %p62 = por %p60, %p61
      %p63 = scmp.ne.s32.totalorder %s54, %s55
      %p64 = scmp.eq.s32.totalorder %s23, 0
      %p65 = por %p63, %p64
      %p66 = scmp.ne.s32.totalorder %s54, %s55
      %p67 = scmp.eq.s32.totalorder %s24, 1
      %p68 = por %p66, %p67
      %p70 = scmp.ne.s32.totalorder %s55, %s69
      %p71 = scmp.eq.s32.totalorder %s24, 0
      %p72 = por %p70, %p71
      %s74 = sadd.s32 %s73, 1
      %p77 = scmp.eq.s32.totalorder %s18, 1
      %p78 = scmp.ne.s32.totalorder %s73, %s75
      %p79 = scmp.eq.s32.totalorder %s18, 0
      %p80 = por %p78, %p79
      %p81 = scmp.ne.s32.totalorder %s73, %s75
      %p82 = scmp.eq.s32.totalorder %s23, 1
      %p83 = por %p81, %p82
      %p84 = scmp.ne.s32.totalorder %s75, %s76
      %p85 = scmp.eq.s32.totalorder %s23, 0
      %p86 = por %p84, %p85
      %p87 = scmp.ne.s32.totalorder %s75, %s76
      %p88 = scmp.eq.s32.totalorder %s24, 1
      %p89 = por %p87, %p88
      %p91 = scmp.ne.s32.totalorder %s76, %s90
      %p92 = scmp.eq.s32.totalorder %s24, 0
      %p93 = por %p91, %p92
      %s94 = ssub.s32 %s18, %s25
      %p95 = scmp.eq.s32.totalorder %s94, 0
      %s97 = sadd.s32 %s96, 1
      %s98 = scalar_select %p95, %s96, %s97
      %p101 = pneg %p95
      %p102 = scmp.eq.s32.totalorder %s18, 1
      %p103 = por %p101, %p102
      %p104 = scmp.ne.s32.totalorder %s96, %s99
      %p105 = scmp.eq.s32.totalorder %s18, 0
      %p106 = por %p104, %p105
      %p107 = scmp.ne.s32.totalorder %s96, %s99
      %p108 = scmp.eq.s32.totalorder %s23, 1
      %p109 = por %p107, %p108
      %p110 = scmp.ne.s32.totalorder %s99, %s100
      %p111 = scmp.eq.s32.totalorder %s23, 0
      %p112 = por %p110, %p111
      %p113 = scmp.ne.s32.totalorder %s99, %s100
      %p114 = scmp.eq.s32.totalorder %s24, 1
      %p115 = por %p113, %p114
      %p117 = scmp.ne.s32.totalorder %s100, %s116
      %p118 = scmp.eq.s32.totalorder %s24, 0
      %p119 = por %p117, %p118
      %s120 = ssub.s32 %s18, %s25
      %p121 = scmp.eq.s32.totalorder %s120, 0
      %s123 = sadd.s32 %s122, 1
      %s124 = scalar_select %p121, %s122, %s123
      %p127 = pneg %p121
      %p128 = scmp.eq.s32.totalorder %s18, 1
      %p129 = por %p127, %p128
      %p130 = scmp.ne.s32.totalorder %s122, %s125
      %p131 = scmp.eq.s32.totalorder %s18, 0
      %p132 = por %p130, %p131
      %p133 = scmp.ne.s32.totalorder %s122, %s125
      %p134 = scmp.eq.s32.totalorder %s23, 1
      %p135 = por %p133, %p134
      %p136 = scmp.ne.s32.totalorder %s125, %s126
      %p137 = scmp.eq.s32.totalorder %s23, 0
      %p138 = por %p136, %p137
      %p139 = scmp.ne.s32.totalorder %s125, %s126
      %p140 = scmp.eq.s32.totalorder %s24, 1
      %p141 = por %p139, %p140
      %p143 = scmp.ne.s32.totalorder %s126, %s142
      %p144 = scmp.eq.s32.totalorder %s24, 0
      %p145 = por %p143, %p144
      %s146 = ssub.s32 %s18, %s25
      %p147 = scmp.eq.s32.totalorder %s146, 0
      %s149 = sadd.s32 %s148, 1
      %s150 = scalar_select %p147, %s148, %s149
      %p153 = pneg %p147
      %p154 = scmp.eq.s32.totalorder %s18, 1
      %p155 = por %p153, %p154
      %p156 = scmp.ne.s32.totalorder %s148, %s151
      %p157 = scmp.eq.s32.totalorder %s18, 0
      %p158 = por %p156, %p157
      %p159 = scmp.ne.s32.totalorder %s148, %s151
      %p160 = scmp.eq.s32.totalorder %s23, 1
      %p161 = por %p159, %p160
      %p162 = scmp.ne.s32.totalorder %s151, %s152
      %p163 = scmp.eq.s32.totalorder %s23, 0
      %p164 = por %p162, %p163
      %p165 = scmp.ne.s32.totalorder %s151, %s152
      %p166 = scmp.eq.s32.totalorder %s24, 1
      %p167 = por %p165, %p166
      %p169 = scmp.ne.s32.totalorder %s152, %s168
      %p170 = scmp.eq.s32.totalorder %s24, 0
      %p171 = por %p169, %p170
      %p172 = scmp.le.s32.totalorder 1, %s18
      %p173 = scmp.lt.s32.totalorder %s18, 3
      %p174 = pnand %p172, %p173
      %p175 = pneg %p174
      // Predicated region
      $region9: #{convlstm_cell_forward.1} parent=5 // pred_check
        _
      $region10: #{convlstm_cell_forward.1} parent=5 // pred_check_branch
        %177 = sbr.rel (%p174) target = $region12
      $region11: #{convlstm_cell_forward.1} parent=5 // pred_region
        %s178 = ssub.s32 %s18, 1
        // Predicated region
        $region13: #{convlstm_cell_forward.1} parent=11 // pred_check
          %p179 = pneg %p65
        $region14: #{convlstm_cell_forward.1} parent=11 // pred_check_branch
          %181 = sbr.rel (%p179) target = $region16
        $region15: #{convlstm_cell_forward.1} parent=11 // pred_region
          _
        $region16: #{convlstm_cell_forward.1} parent=11 // pred_fallthru
          _
        // Predicated region
        $region17: #{convlstm_cell_forward.1} parent=11 // pred_check
          %p182 = pneg %p86
        $region18: #{convlstm_cell_forward.1} parent=11 // pred_check_branch
          %184 = sbr.rel (%p182) target = $region20
        $region19: #{convlstm_cell_forward.1} parent=11 // pred_region
          _
        $region20: #{convlstm_cell_forward.1} parent=11 // pred_fallthru
          _
      $region12: #{convlstm_cell_forward.1} parent=5 // pred_fallthru
        _
      %p185 = scmp.lt.s32.totalorder %s18, 2
      // Predicated region
      $region21: #{convlstm_cell_forward.1} parent=5 // pred_check
        %p186 = pneg %p185
      $region22: #{convlstm_cell_forward.1} parent=5 // pred_check_branch
        %188 = sbr.rel (%p186) target = $region24
      $region23: #{convlstm_cell_forward.1} parent=5 // pred_region
        // Predicated region
        $region25: #{convlstm_cell_forward.1} parent=23 // pred_check
          %p189 = pneg %p38
        $region26: #{convlstm_cell_forward.1} parent=23 // pred_check_branch
          %191 = sbr.rel (%p189) target = $region28
        $region27: #{convlstm_cell_forward.1} parent=23 // pred_region
          %s192 = smul.u32 32, %s18
          %p193 = scmp.lt.s32.totalorder %s192, 63
          %s194 = scalar_select %p193, %s192, 63
          %s195 = smul.addr %s194, 3
          %s196 = smul.addr %s195, 4
          %s197 = scalar_lea.vmem %s0, %s196
          %s198 = smul.u32 32, %s18
        $region28: #{convlstm_cell_forward.1} parent=23 // pred_fallthru
          _
        // Predicated region
        $region29: #{convlstm_cell_forward.1} parent=23 // pred_check
          %p199 = pneg %p106
        $region30: #{convlstm_cell_forward.1} parent=23 // pred_check_branch
          %201 = sbr.rel (%p199) target = $region32
        $region31: #{convlstm_cell_forward.1} parent=23 // pred_region
          %s202 = smul.u32 32, %s18
          %p203 = scmp.lt.s32.totalorder %s202, 63
          %s204 = scalar_select %p203, %s202, 63
          %s205 = smul.addr %s204, 8
          %s206 = scalar_lea.vmem %s3, %s205
          %s207 = smul.u32 32, %s18
        $region32: #{convlstm_cell_forward.1} parent=23 // pred_fallthru
          _
      $region24: #{convlstm_cell_forward.1} parent=5 // pred_fallthru
        _
      %p208 = scmp.le.s32.totalorder 1, %s18
      %p209 = scmp.lt.s32.totalorder %s18, 3
      %p210 = pnand %p208, %p209
      %p211 = pneg %p210
      // Predicated region
      $region33: #{convlstm_cell_forward.1} parent=5 // pred_check
        _
      $region34: #{convlstm_cell_forward.1} parent=5 // pred_check_branch
        %213 = sbr.rel (%p210) target = $region36
      $region35: #{convlstm_cell_forward.1} parent=5 // pred_region
        %s214 = ssub.s32 %s18, 1
        %s215 = smul.u32 32, %s23
        %p216 = scmp.lt.s32.totalorder %s215, 63
        %s217 = scalar_select %p216, %s215, 63
        %s218 = smul.addr %s217, 3
        %s219 = smul.addr %s218, 4
        %s220 = scalar_lea.vmem %s0, %s219
        %p221 = pneg %p44
        %p222 = pneg %p41
        %p223 = pneg %p65
        %p224 = pneg %p62
        %p225 = pneg %p86
        %p226 = pneg %p83
        %s227 = smul.u32 32, %s23
        %p228 = scmp.lt.s32.totalorder %s227, 63
        %s229 = scalar_select %p228, %s227, 63
        %s230 = smul.addr %s229, 8
        %s231 = scalar_lea.vmem %s3, %s230
        %p232 = pneg %p112
        %p233 = pneg %p109
        %p234 = pneg %p138
        %p235 = pneg %p135
        %s236 = sand.u32 %s125, 1
        %s237 = scalar_lea.sflag [#allocation3], %s236
        %s238 = sand.u32 %s125, 1
        %s239 = smul.addr %s238, 256
        %s240 = scalar_lea.vmem [#allocation2], %s239
        %p241 = pneg %p164
        %p242 = pneg %p161
        %s243 = sand.u32 %s151, 1
        %s244 = scalar_lea.sflag [#allocation5], %s243
        %s245 = sand.u32 %s151, 1
        %s246 = smul.addr %s245, 256
        %s247 = scalar_lea.vmem [#allocation4], %s246
        %s248 = smul.u32 32, %s23
        %p249 = scmp.lt.s32.totalorder %s248, 63
        %s250 = scalar_select %p249, %s248, 63
        %s251 = smul.addr %s250, 3
        %s252 = smul.addr %s251, 4
        %s253 = scalar_lea.vmem %s0, %s252
        %s254 = smul.u32 32, %s23
        %s255 = smul.u32 32, %s23
        %p256 = scmp.lt.s32.totalorder %s255, 63
        %s257 = scalar_select %p256, %s255, 63
        %s258 = smul.addr %s257, 8
        %s259 = scalar_lea.vmem %s3, %s258
        %s260 = smul.u32 32, %s23
        %s261 = smul.u32 32, %s23
        %s262 = smul.u32 32, %s23
        %v264 = vld [vmem:[%s253] sm:$0xff]
        %v265 = vld [vmem:[%s253 + $0x8] sm:$0xf]
        %v266 = vld [vmem:[%s253 + $0xc] sm:$0xff]
        %v267 = vld [vmem:[%s253 + $0x14] sm:$0xf]
        %v268 = vld [vmem:[%s253 + $0x18] sm:$0xff]
        %v269 = vld [vmem:[%s253 + $0x20] sm:$0xf]
        %v270 = vld [vmem:[%s253 + $0x24] sm:$0xff]
        %v271 = vld [vmem:[%s253 + $0x2c] sm:$0xf]
        %v272 = vld [vmem:[%s253 + $0x30] sm:$0xff]
        %v273 = vld [vmem:[%s253 + $0x38] sm:$0xf]
        %v274 = vld [vmem:[%s253 + $0x3c] sm:$0xff]
        %v275 = vld [vmem:[%s253 + $0x44] sm:$0xf]
        %v276 = vld [vmem:[%s253 + $0x48] sm:$0xff]
        %v277 = vld [vmem:[%s253 + $0x50] sm:$0xf]
        %v278 = vld [vmem:[%s253 + $0x54] sm:$0xff]
        %v279 = vld [vmem:[%s253 + $0x5c] sm:$0xf]
        %v280 = vld [vmem:[%s253 + $0x60] sm:$0xff]
        %v281 = vld [vmem:[%s253 + $0x68] sm:$0xf]
        %v282 = vld [vmem:[%s253 + $0x6c] sm:$0xff]
        %v283 = vld [vmem:[%s253 + $0x74] sm:$0xf]
        %v284 = vld [vmem:[%s253 + $0x78] sm:$0xff]
        %v285 = vld [vmem:[%s253 + $0x80] sm:$0xf]
        %v286 = vld [vmem:[%s253 + $0x84] sm:$0xff]
        %v287 = vld [vmem:[%s253 + $0x8c] sm:$0xf]
        %v288 = vld [vmem:[%s253 + $0x90] sm:$0xff]
        %v289 = vld [vmem:[%s253 + $0x98] sm:$0xf]
        %v290 = vld [vmem:[%s253 + $0x9c] sm:$0xff]
        %v291 = vld [vmem:[%s253 + $0xa4] sm:$0xf]
        %v292 = vld [vmem:[%s253 + $0xa8] sm:$0xff]
        %v293 = vld [vmem:[%s253 + $0xb0] sm:$0xf]
        %v294 = vld [vmem:[%s253 + $0xb4] sm:$0xff]
        %v295 = vld [vmem:[%s253 + $0xbc] sm:$0xf]
        %v296 = vld [vmem:[%s253 + $0xc0] sm:$0xff]
        %v297 = vld [vmem:[%s253 + $0xc8] sm:$0xf]
        %v298 = vld [vmem:[%s253 + $0xcc] sm:$0xff]
        %v299 = vld [vmem:[%s253 + $0xd4] sm:$0xf]
        %v300 = vld [vmem:[%s253 + $0xd8] sm:$0xff]
        %v301 = vld [vmem:[%s253 + $0xe0] sm:$0xf]
        %v302 = vld [vmem:[%s253 + $0xe4] sm:$0xff]
        %v303 = vld [vmem:[%s253 + $0xec] sm:$0xf]
        %v304 = vld [vmem:[%s253 + $0xf0] sm:$0xff]
        %v305 = vld [vmem:[%s253 + $0xf8] sm:$0xf]
        %v306 = vld [vmem:[%s253 + $0xfc] sm:$0xff]
        %v307 = vld [vmem:[%s253 + $0x104] sm:$0xf]
        %v308 = vld [vmem:[%s253 + $0x108] sm:$0xff]
        %v309 = vld [vmem:[%s253 + $0x110] sm:$0xf]
        %v310 = vld [vmem:[%s253 + $0x114] sm:$0xff]
        %v311 = vld [vmem:[%s253 + $0x11c] sm:$0xf]
        %v312 = vld [vmem:[%s253 + $0x120] sm:$0xff]
        %v313 = vld [vmem:[%s253 + $0x128] sm:$0xf]
        %v314 = vld [vmem:[%s253 + $0x12c] sm:$0xff]
        %v315 = vld [vmem:[%s253 + $0x134] sm:$0xf]
        %v316 = vld [vmem:[%s253 + $0x138] sm:$0xff]
        %v317 = vld [vmem:[%s253 + $0x140] sm:$0xf]
        %v318 = vld [vmem:[%s253 + $0x144] sm:$0xff]
        %v319 = vld [vmem:[%s253 + $0x14c] sm:$0xf]
        %v320 = vld [vmem:[%s253 + $0x150] sm:$0xff]
        %v321 = vld [vmem:[%s253 + $0x158] sm:$0xf]
        %v322 = vld [vmem:[%s253 + $0x15c] sm:$0xff]
        %v323 = vld [vmem:[%s253 + $0x164] sm:$0xf]
        %v324 = vld [vmem:[%s253 + $0x168] sm:$0xff]
        %v325 = vld [vmem:[%s253 + $0x170] sm:$0xf]
        %v326 = vld [vmem:[%s253 + $0x174] sm:$0xff]
        %v327 = vld [vmem:[%s253 + $0x17c] sm:$0xf]
        %v328 = vld [vmem:[%s1] sm:$0xf]
        %v329 = vld [vmem:[%s1 + $0x4] sm:$0xf]
        %v330 = vld [vmem:[%s1 + $0x8] sm:$0xf]
        %v331 = vld [vmem:[%s1 + $0xc] sm:$0xf]
        %v332 = vld [vmem:[%s1 + $0x10] sm:$0xf]
        %v333 = vld [vmem:[%s1 + $0x14] sm:$0xf]
        %v334 = vld [vmem:[%s1 + $0x18] sm:$0xf]
        %v335 = vld [vmem:[%s1 + $0x1c] sm:$0xf]
        %v336 = vld [vmem:[%s1 + $0x20] sm:$0xf]
        %v337 = vld [vmem:[%s1 + $0x24] sm:$0xf]
        %v338 = vld [vmem:[%s1 + $0x28] sm:$0xf]
        %v339 = vld [vmem:[%s1 + $0x2c] sm:$0xf]
        %v340 = vld [vmem:[%s1 + $0x30] sm:$0xf]
        %v341 = vld [vmem:[%s1 + $0x34] sm:$0xf]
        %v342 = vld [vmem:[%s1 + $0x38] sm:$0xf]
        %v343 = vld [vmem:[%s1 + $0x3c] sm:$0xf]
        %v344 = vld [vmem:[%s1 + $0x40] sm:$0xf]
        %v345 = vld [vmem:[%s1 + $0x44] sm:$0xf]
        %v346 = vld [vmem:[%s1 + $0x48] sm:$0xf]
        %v347 = vld [vmem:[%s1 + $0x4c] sm:$0xf]
        %v348 = vld [vmem:[%s1 + $0x50] sm:$0xf]
        %v349 = vld [vmem:[%s1 + $0x54] sm:$0xf]
        %v350 = vld [vmem:[%s1 + $0x58] sm:$0xf]
        %v351 = vld [vmem:[%s1 + $0x5c] sm:$0xf]
        %v352 = vld [vmem:[%s1 + $0x60] sm:$0xf]
        %v353 = vld [vmem:[%s1 + $0x64] sm:$0xf]
        %v354 = vld [vmem:[%s1 + $0x68] sm:$0xf]
        %v355 = vld [vmem:[%s1 + $0x6c] sm:$0xf]
        %v356 = vld [vmem:[%s1 + $0x70] sm:$0xf]
        %v357 = vld [vmem:[%s1 + $0x74] sm:$0xf]
        %v358 = vld [vmem:[%s1 + $0x78] sm:$0xf]
        %v359 = vld [vmem:[%s1 + $0x7c] sm:$0xf]
        %v360 = vld [vmem:[%s1 + $0x80] sm:$0xf]
        %v361 = vld [vmem:[%s1 + $0x84] sm:$0xf]
        %v362 = vld [vmem:[%s1 + $0x88] sm:$0xf]
        %v363 = vld [vmem:[%s1 + $0x8c] sm:$0xf]
        %v364 = vld [vmem:[%s1 + $0x90] sm:$0xf]
        %v365 = vld [vmem:[%s1 + $0x94] sm:$0xf]
        %v366 = vld [vmem:[%s1 + $0x98] sm:$0xf]
        %v367 = vld [vmem:[%s1 + $0x9c] sm:$0xf]
        %v368 = vld [vmem:[%s1 + $0xa0] sm:$0x3]
        %v369 = vld [vmem:[%s2] sm:$0x1]
        %v371 = vperm.slane %v369, 0
        %v437 = vunpack.c.l.b16 %v264
        %v438 = vunpack.c.h.b16 %v264
        %v439 = vunpack.c.l.b16 %v265
        %v440 = vunpack.c.l.b16 %v266
        %v441 = vunpack.c.h.b16 %v266
        %v442 = vunpack.c.l.b16 %v267
        %v443 = vunpack.c.l.b16 %v268
        %v444 = vunpack.c.h.b16 %v268
        %v445 = vunpack.c.l.b16 %v269
        %v446 = vunpack.c.l.b16 %v270
        %v447 = vunpack.c.h.b16 %v270
        %v448 = vunpack.c.l.b16 %v271
        %v449 = vunpack.c.l.b16 %v272
        %v450 = vunpack.c.h.b16 %v272
        %v451 = vunpack.c.l.b16 %v273
        %v452 = vunpack.c.l.b16 %v274
        %v453 = vunpack.c.h.b16 %v274
        %v454 = vunpack.c.l.b16 %v275
        %v455 = vunpack.c.l.b16 %v276
        %v456 = vunpack.c.h.b16 %v276
        %v457 = vunpack.c.l.b16 %v277
        %v458 = vunpack.c.l.b16 %v278
        %v459 = vunpack.c.h.b16 %v278
        %v460 = vunpack.c.l.b16 %v279
        %v461 = vunpack.c.l.b16 %v280
        %v462 = vunpack.c.h.b16 %v280
        %v463 = vunpack.c.l.b16 %v281
        %v464 = vunpack.c.l.b16 %v282
        %v465 = vunpack.c.h.b16 %v282
        %v466 = vunpack.c.l.b16 %v283
        %v467 = vunpack.c.l.b16 %v284
        %v468 = vunpack.c.h.b16 %v284
        %v469 = vunpack.c.l.b16 %v285
        %v470 = vunpack.c.l.b16 %v286
        %v471 = vunpack.c.h.b16 %v286
        %v472 = vunpack.c.l.b16 %v287
        %v473 = vunpack.c.l.b16 %v288
        %v474 = vunpack.c.h.b16 %v288
        %v475 = vunpack.c.l.b16 %v289
        %v476 = vunpack.c.l.b16 %v290
        %v477 = vunpack.c.h.b16 %v290
        %v478 = vunpack.c.l.b16 %v291
        %v479 = vunpack.c.l.b16 %v292
        %v480 = vunpack.c.h.b16 %v292
        %v481 = vunpack.c.l.b16 %v293
        %v482 = vunpack.c.l.b16 %v294
        %v483 = vunpack.c.h.b16 %v294
        %v484 = vunpack.c.l.b16 %v295
        %v485 = vunpack.c.l.b16 %v296
        %v486 = vunpack.c.h.b16 %v296
        %v487 = vunpack.c.l.b16 %v297
        %v488 = vunpack.c.l.b16 %v298
        %v489 = vunpack.c.h.b16 %v298
        %v490 = vunpack.c.l.b16 %v299
        %v491 = vunpack.c.l.b16 %v300
        %v492 = vunpack.c.h.b16 %v300
        %v493 = vunpack.c.l.b16 %v301
        %v494 = vunpack.c.l.b16 %v302
        %v495 = vunpack.c.h.b16 %v302
        %v496 = vunpack.c.l.b16 %v303
        %v497 = vunpack.c.l.b16 %v304
        %v498 = vunpack.c.h.b16 %v304
        %v499 = vunpack.c.l.b16 %v305
        %v500 = vunpack.c.l.b16 %v306
        %v501 = vunpack.c.h.b16 %v306
        %v502 = vunpack.c.l.b16 %v307
        %v503 = vunpack.c.l.b16 %v308
        %v504 = vunpack.c.h.b16 %v308
        %v505 = vunpack.c.l.b16 %v309
        %v506 = vunpack.c.l.b16 %v310
        %v507 = vunpack.c.h.b16 %v310
        %v508 = vunpack.c.l.b16 %v311
        %v509 = vunpack.c.l.b16 %v312
        %v510 = vunpack.c.h.b16 %v312
        %v511 = vunpack.c.l.b16 %v313
        %v512 = vunpack.c.l.b16 %v314
        %v513 = vunpack.c.h.b16 %v314
        %v514 = vunpack.c.l.b16 %v315
        %v515 = vunpack.c.l.b16 %v316
        %v516 = vunpack.c.h.b16 %v316
        %v517 = vunpack.c.l.b16 %v317
        %v518 = vunpack.c.l.b16 %v318
        %v519 = vunpack.c.h.b16 %v318
        %v520 = vunpack.c.l.b16 %v319
        %v521 = vunpack.c.l.b16 %v320
        %v522 = vunpack.c.h.b16 %v320
        %v523 = vunpack.c.l.b16 %v321
        %v524 = vunpack.c.l.b16 %v322
        %v525 = vunpack.c.h.b16 %v322
        %v526 = vunpack.c.l.b16 %v323
        %v527 = vunpack.c.l.b16 %v324
        %v528 = vunpack.c.h.b16 %v324
        %v529 = vunpack.c.l.b16 %v325
        %v530 = vunpack.c.l.b16 %v326
        %v531 = vunpack.c.h.b16 %v326
        %v532 = vunpack.c.l.b16 %v327
        %v533 = vpack.c.b16 %v440, %v437
        %v534 = vpack.c.b16 %v441, %v438
        %v535 = vpack.c.b16 %v442, %v439
        %v536 = vpack.c.b16 %v446, %v443
        %v537 = vpack.c.b16 %v447, %v444
        %v538 = vpack.c.b16 %v448, %v445
        %v539 = vpack.c.b16 %v452, %v449
        %v540 = vpack.c.b16 %v453, %v450
        %v541 = vpack.c.b16 %v454, %v451
        %v542 = vpack.c.b16 %v458, %v455
        %v543 = vpack.c.b16 %v459, %v456
        %v544 = vpack.c.b16 %v460, %v457
        %v545 = vpack.c.b16 %v464, %v461
        %v546 = vpack.c.b16 %v465, %v462
        %v547 = vpack.c.b16 %v466, %v463
        %v548 = vpack.c.b16 %v470, %v467
        %v549 = vpack.c.b16 %v471, %v468
        %v550 = vpack.c.b16 %v472, %v469
        %v551 = vpack.c.b16 %v476, %v473
        %v552 = vpack.c.b16 %v477, %v474
        %v553 = vpack.c.b16 %v478, %v475
        %v554 = vpack.c.b16 %v482, %v479
        %v555 = vpack.c.b16 %v483, %v480
        %v556 = vpack.c.b16 %v484, %v481
        %v557 = vpack.c.b16 %v488, %v485
        %v558 = vpack.c.b16 %v489, %v486
        %v559 = vpack.c.b16 %v490, %v487
        %v560 = vpack.c.b16 %v494, %v491
        %v561 = vpack.c.b16 %v495, %v492
        %v562 = vpack.c.b16 %v496, %v493
        %v563 = vpack.c.b16 %v500, %v497
        %v564 = vpack.c.b16 %v501, %v498
        %v565 = vpack.c.b16 %v502, %v499
        %v566 = vpack.c.b16 %v506, %v503
        %v567 = vpack.c.b16 %v507, %v504
        %v568 = vpack.c.b16 %v508, %v505
        %v569 = vpack.c.b16 %v512, %v509
        %v570 = vpack.c.b16 %v513, %v510
        %v571 = vpack.c.b16 %v514, %v511
        %v572 = vpack.c.b16 %v518, %v515
        %v573 = vpack.c.b16 %v519, %v516
        %v574 = vpack.c.b16 %v520, %v517
        %v575 = vpack.c.b16 %v524, %v521
        %v576 = vpack.c.b16 %v525, %v522
        %v577 = vpack.c.b16 %v526, %v523
        %v578 = vpack.c.b16 %v530, %v527
        %v579 = vpack.c.b16 %v531, %v528
        %v580 = vpack.c.b16 %v532, %v529
        %v654 = vunpack.c.l.b16 %v328
        %v655 = vunpack.c.l.b16 %v329
        %v656 = vunpack.c.l.b16 %v330
        %v657 = vunpack.c.l.b16 %v331
        %v658 = vunpack.c.l.b16 %v332
        %v659 = vunpack.c.l.b16 %v333
        %v660 = vunpack.c.l.b16 %v334
        %v661 = vunpack.c.l.b16 %v335
        %v662 = vunpack.c.l.b16 %v336
        %v663 = vunpack.c.l.b16 %v337
        %v664 = vunpack.c.l.b16 %v338
        %v665 = vunpack.c.l.b16 %v339
        %v666 = vunpack.c.l.b16 %v340
        %v667 = vunpack.c.l.b16 %v341
        %v668 = vunpack.c.l.b16 %v342
        %v669 = vunpack.c.l.b16 %v343
        %v670 = vunpack.c.l.b16 %v344
        %v671 = vunpack.c.l.b16 %v345
        %v672 = vunpack.c.l.b16 %v346
        %v673 = vunpack.c.l.b16 %v347
        %v674 = vunpack.c.l.b16 %v348
        %v675 = vunpack.c.l.b16 %v349
        %v676 = vunpack.c.l.b16 %v350
        %v677 = vunpack.c.l.b16 %v351
        %v678 = vunpack.c.l.b16 %v352
        %v679 = vunpack.c.l.b16 %v353
        %v680 = vunpack.c.l.b16 %v354
        %v681 = vunpack.c.l.b16 %v355
        %v682 = vunpack.c.l.b16 %v356
        %v683 = vunpack.c.l.b16 %v357
        %v684 = vunpack.c.l.b16 %v358
        %v685 = vunpack.c.l.b16 %v359
        %v686 = vunpack.c.l.b16 %v360
        %v687 = vunpack.c.l.b16 %v361
        %v688 = vunpack.c.l.b16 %v362
        %v689 = vunpack.c.l.b16 %v363
        %v690 = vunpack.c.l.b16 %v364
        %v691 = vunpack.c.l.b16 %v365
        %v692 = vunpack.c.l.b16 %v366
        %v693 = vunpack.c.l.b16 %v367
        %v694 = vunpack.c.l.b16 %v368
        %v695 = vpack.c.b16 %v655, %v654
        %v696 = vpack.c.b16 %v657, %v656
        %v697 = vpack.c.b16 %v659, %v658
        %v698 = vpack.c.b16 %v661, %v660
        %v699 = vpack.c.b16 %v663, %v662
        %v700 = vpack.c.b16 %v665, %v664
        %v701 = vpack.c.b16 %v667, %v666
        %v702 = vpack.c.b16 %v669, %v668
        %v703 = vpack.c.b16 %v671, %v670
        %v704 = vpack.c.b16 %v673, %v672
        %v705 = vpack.c.b16 %v675, %v674
        %v706 = vpack.c.b16 %v677, %v676
        %v707 = vpack.c.b16 %v679, %v678
        %v708 = vpack.c.b16 %v681, %v680
        %v709 = vpack.c.b16 %v683, %v682
        %v710 = vpack.c.b16 %v685, %v684
        %v711 = vpack.c.b16 %v687, %v686
        %v712 = vpack.c.b16 %v689, %v688
        %v713 = vpack.c.b16 %v691, %v690
        %v714 = vpack.c.b16 %v693, %v692
        %v715 = vpack.c.b16 %v694, %v694
        %vm736 = vcmask 556032
        %v738 = vsel %vm736, %v535, 0
        %v741 = vsel %vm736, %v538, 0
        %v744 = vsel %vm736, %v541, 0
        %v747 = vsel %vm736, %v544, 0
        %v750 = vsel %vm736, %v547, 0
        %v753 = vsel %vm736, %v550, 0
        %v756 = vsel %vm736, %v553, 0
        %v759 = vsel %vm736, %v556, 0
        %v762 = vsel %vm736, %v559, 0
        %v765 = vsel %vm736, %v562, 0
        %v768 = vsel %vm736, %v565, 0
        %v771 = vsel %vm736, %v568, 0
        %v774 = vsel %vm736, %v571, 0
        %v777 = vsel %vm736, %v574, 0
        %v780 = vsel %vm736, %v577, 0
        %v783 = vsel %vm736, %v580, 0
        %vm785 = vcmask 1041408
        %v787 = vsel %vm785, %v715, 0
        %789 = vmatpush.bf16.msra.mxu0 %v702
        %790 = vmatpush.bf16.msra.mxu0 %v701
        %791 = vmatpush.bf16.msra.mxu0 %v700
        %792 = vmatpush.bf16.msra.mxu0 %v699
        %793 = vmatpush.bf16.msra.mxu0 %v698
        %794 = vmatpush.bf16.msra.mxu0 %v697
        %795 = vmatpush.bf16.msra.mxu0 %v696
        %796 = vmatpush.bf16.msra.mxu0 %v695
        %797 = vmatmul.bf16.gmra.mxu0 %v533
        %v798 = vpop.f32.mrf.mxu0
        %v799 = vadd.f32 %v371, %v798
        %v800 = vpop.f32.mrf.mxu0
        %v801 = vadd.f32 %v371, %v800
        %802 = vmatmul.bf16.gmra.mxu0 %v536
        %v803 = vpop.f32.mrf.mxu0
        %v804 = vadd.f32 %v371, %v803
        %v805 = vpop.f32.mrf.mxu0
        %v806 = vadd.f32 %v371, %v805
        %807 = vmatmul.bf16.gmra.mxu0 %v539
        %v808 = vpop.f32.mrf.mxu0
        %v809 = vadd.f32 %v371, %v808
        %v810 = vpop.f32.mrf.mxu0
        %v811 = vadd.f32 %v371, %v810
        %812 = vmatmul.bf16.gmra.mxu0 %v542
        %v813 = vpop.f32.mrf.mxu0
        %v814 = vadd.f32 %v371, %v813
        %v815 = vpop.f32.mrf.mxu0
        %v816 = vadd.f32 %v371, %v815
        %817 = vmatmul.bf16.gmra.mxu0 %v545
        %v818 = vpop.f32.mrf.mxu0
        %v819 = vadd.f32 %v371, %v818
        %v820 = vpop.f32.mrf.mxu0
        %v821 = vadd.f32 %v371, %v820
        %822 = vmatmul.bf16.gmra.mxu0 %v548
        %v823 = vpop.f32.mrf.mxu0
        %v824 = vadd.f32 %v371, %v823
        %v825 = vpop.f32.mrf.mxu0
        %v826 = vadd.f32 %v371, %v825
        %827 = vmatmul.bf16.gmra.mxu0 %v551
        %v828 = vpop.f32.mrf.mxu0
        %v829 = vadd.f32 %v371, %v828
        %v830 = vpop.f32.mrf.mxu0
        %v831 = vadd.f32 %v371, %v830
        %832 = vmatmul.bf16.gmra.mxu0 %v554
        %v833 = vpop.f32.mrf.mxu0
        %v834 = vadd.f32 %v371, %v833
        %v835 = vpop.f32.mrf.mxu0
        %v836 = vadd.f32 %v371, %v835
        %837 = vmatmul.bf16.gmra.mxu0 %v557
        %v838 = vpop.f32.mrf.mxu0
        %v839 = vadd.f32 %v371, %v838
        %v840 = vpop.f32.mrf.mxu0
        %v841 = vadd.f32 %v371, %v840
        %842 = vmatmul.bf16.gmra.mxu0 %v560
        %v843 = vpop.f32.mrf.mxu0
        %v844 = vadd.f32 %v371, %v843
        %v845 = vpop.f32.mrf.mxu0
        %v846 = vadd.f32 %v371, %v845
        %847 = vmatmul.bf16.gmra.mxu0 %v563
        %v848 = vpop.f32.mrf.mxu0
        %v849 = vadd.f32 %v371, %v848
        %v850 = vpop.f32.mrf.mxu0
        %v851 = vadd.f32 %v371, %v850
        %852 = vmatmul.bf16.gmra.mxu0 %v566
        %v853 = vpop.f32.mrf.mxu0
        %v854 = vadd.f32 %v371, %v853
        %v855 = vpop.f32.mrf.mxu0
        %v856 = vadd.f32 %v371, %v855
        %857 = vmatmul.bf16.gmra.mxu0 %v569
        %v858 = vpop.f32.mrf.mxu0
        %v859 = vadd.f32 %v371, %v858
        %v860 = vpop.f32.mrf.mxu0
        %v861 = vadd.f32 %v371, %v860
        %862 = vmatmul.bf16.gmra.mxu0 %v572
        %v863 = vpop.f32.mrf.mxu0
        %v864 = vadd.f32 %v371, %v863
        %v865 = vpop.f32.mrf.mxu0
        %v866 = vadd.f32 %v371, %v865
        %867 = vmatmul.bf16.gmra.mxu0 %v575
        %v868 = vpop.f32.mrf.mxu0
        %v869 = vadd.f32 %v371, %v868
        %v870 = vpop.f32.mrf.mxu0
        %v871 = vadd.f32 %v371, %v870
        %872 = vmatmul.bf16.gmra.mxu0 %v578
        %v873 = vpop.f32.mrf.mxu0
        %v874 = vadd.f32 %v371, %v873
        %v875 = vpop.f32.mrf.mxu0
        %v876 = vadd.f32 %v371, %v875
        %877 = vdwg.mxu0
        %878 = vmatpush.bf16.msra.mxu0 %v710
        %879 = vmatpush.bf16.msra.mxu0 %v709
        %880 = vmatpush.bf16.msra.mxu0 %v708
        %881 = vmatpush.bf16.msra.mxu0 %v707
        %882 = vmatpush.bf16.msra.mxu0 %v706
        %883 = vmatpush.bf16.msra.mxu0 %v705
        %884 = vmatpush.bf16.msra.mxu0 %v704
        %885 = vmatpush.bf16.msra.mxu0 %v703
        %886 = vmatmul.bf16.gmra.mxu0 %v534
        %v887 = vpop.f32.mrf.mxu0
        %v888 = vadd.f32 %v799, %v887
        %v889 = vpop.f32.mrf.mxu0
        %v890 = vadd.f32 %v801, %v889
        %891 = vmatmul.bf16.gmra.mxu0 %v537
        %v892 = vpop.f32.mrf.mxu0
        %v893 = vadd.f32 %v804, %v892
        %v894 = vpop.f32.mrf.mxu0
        %v895 = vadd.f32 %v806, %v894
        %896 = vmatmul.bf16.gmra.mxu0 %v540
        %v897 = vpop.f32.mrf.mxu0
        %v898 = vadd.f32 %v809, %v897
        %v899 = vpop.f32.mrf.mxu0
        %v900 = vadd.f32 %v811, %v899
        %901 = vmatmul.bf16.gmra.mxu0 %v543
        %v902 = vpop.f32.mrf.mxu0
        %v903 = vadd.f32 %v814, %v902
        %v904 = vpop.f32.mrf.mxu0
        %v905 = vadd.f32 %v816, %v904
        %906 = vmatmul.bf16.gmra.mxu0 %v546
        %v907 = vpop.f32.mrf.mxu0
        %v908 = vadd.f32 %v819, %v907
        %v909 = vpop.f32.mrf.mxu0
        %v910 = vadd.f32 %v821, %v909
        %911 = vmatmul.bf16.gmra.mxu0 %v549
        %v912 = vpop.f32.mrf.mxu0
        %v913 = vadd.f32 %v824, %v912
        %v914 = vpop.f32.mrf.mxu0
        %v915 = vadd.f32 %v826, %v914
        %916 = vmatmul.bf16.gmra.mxu0 %v552
        %v917 = vpop.f32.mrf.mxu0
        %v918 = vadd.f32 %v829, %v917
        %v919 = vpop.f32.mrf.mxu0
        %v920 = vadd.f32 %v831, %v919
        %921 = vmatmul.bf16.gmra.mxu0 %v555
        %v922 = vpop.f32.mrf.mxu0
        %v923 = vadd.f32 %v834, %v922
        %v924 = vpop.f32.mrf.mxu0
        %v925 = vadd.f32 %v836, %v924
        %926 = vmatmul.bf16.gmra.mxu0 %v558
        %v927 = vpop.f32.mrf.mxu0
        %v928 = vadd.f32 %v839, %v927
        %v929 = vpop.f32.mrf.mxu0
        %v930 = vadd.f32 %v841, %v929
        %931 = vmatmul.bf16.gmra.mxu0 %v561
        %v932 = vpop.f32.mrf.mxu0
        %v933 = vadd.f32 %v844, %v932
        %v934 = vpop.f32.mrf.mxu0
        %v935 = vadd.f32 %v846, %v934
        %936 = vmatmul.bf16.gmra.mxu0 %v564
        %v937 = vpop.f32.mrf.mxu0
        %v938 = vadd.f32 %v849, %v937
        %v939 = vpop.f32.mrf.mxu0
        %v940 = vadd.f32 %v851, %v939
        %941 = vmatmul.bf16.gmra.mxu0 %v567
        %v942 = vpop.f32.mrf.mxu0
        %v943 = vadd.f32 %v854, %v942
        %v944 = vpop.f32.mrf.mxu0
        %v945 = vadd.f32 %v856, %v944
        %946 = vmatmul.bf16.gmra.mxu0 %v570
        %v947 = vpop.f32.mrf.mxu0
        %v948 = vadd.f32 %v859, %v947
        %v949 = vpop.f32.mrf.mxu0
        %v950 = vadd.f32 %v861, %v949
        %951 = vmatmul.bf16.gmra.mxu0 %v573
        %v952 = vpop.f32.mrf.mxu0
        %v953 = vadd.f32 %v864, %v952
        %v954 = vpop.f32.mrf.mxu0
        %v955 = vadd.f32 %v866, %v954
        %956 = vmatmul.bf16.gmra.mxu0 %v576
        %v957 = vpop.f32.mrf.mxu0
        %v958 = vadd.f32 %v869, %v957
        %v959 = vpop.f32.mrf.mxu0
        %v960 = vadd.f32 %v871, %v959
        %961 = vmatmul.bf16.gmra.mxu0 %v579
        %v962 = vpop.f32.mrf.mxu0
        %v963 = vadd.f32 %v874, %v962
        %v964 = vpop.f32.mrf.mxu0
        %v965 = vadd.f32 %v876, %v964
        %966 = vdwg.mxu0
        %967 = vmatpush.bf16.msra.mxu0 0
        %968 = vmatpush.bf16.msra.mxu0 0
        %969 = vmatpush.bf16.msra.mxu0 0
        %970 = vmatpush.bf16.msra.mxu0 %v787
        %971 = vmatpush.bf16.msra.mxu0 %v714
        %972 = vmatpush.bf16.msra.mxu0 %v713
        %973 = vmatpush.bf16.msra.mxu0 %v712
        %974 = vmatpush.bf16.msra.mxu0 %v711
        %975 = vmatmul.bf16.gmra.mxu0 %v738
        %v976 = vpop.f32.mrf.mxu0
        %v977 = vadd.f32 %v888, %v976
        %v978 = vpop.f32.mrf.mxu0
        %v979 = vadd.f32 %v890, %v978
        %980 = vmatmul.bf16.gmra.mxu0 %v741
        %v981 = vpop.f32.mrf.mxu0
        %v982 = vadd.f32 %v893, %v981
        %v983 = vpop.f32.mrf.mxu0
        %v984 = vadd.f32 %v895, %v983
        %985 = vmatmul.bf16.gmra.mxu0 %v744
        %v986 = vpop.f32.mrf.mxu0
        %v987 = vadd.f32 %v898, %v986
        %v988 = vpop.f32.mrf.mxu0
        %v989 = vadd.f32 %v900, %v988
        %990 = vmatmul.bf16.gmra.mxu0 %v747
        %v991 = vpop.f32.mrf.mxu0
        %v992 = vadd.f32 %v903, %v991
        %v993 = vpop.f32.mrf.mxu0
        %v994 = vadd.f32 %v905, %v993
        %995 = vmatmul.bf16.gmra.mxu0 %v750
        %v996 = vpop.f32.mrf.mxu0
        %v997 = vadd.f32 %v908, %v996
        %v998 = vpop.f32.mrf.mxu0
        %v999 = vadd.f32 %v910, %v998
        %1000 = vmatmul.bf16.gmra.mxu0 %v753
        %v1001 = vpop.f32.mrf.mxu0
        %v1002 = vadd.f32 %v913, %v1001
        %v1003 = vpop.f32.mrf.mxu0
        %v1004 = vadd.f32 %v915, %v1003
        %1005 = vmatmul.bf16.gmra.mxu0 %v756
        %v1006 = vpop.f32.mrf.mxu0
        %v1007 = vadd.f32 %v918, %v1006
        %v1008 = vpop.f32.mrf.mxu0
        %v1009 = vadd.f32 %v920, %v1008
        %1010 = vmatmul.bf16.gmra.mxu0 %v759
        %v1011 = vpop.f32.mrf.mxu0
        %v1012 = vadd.f32 %v923, %v1011
        %v1013 = vpop.f32.mrf.mxu0
        %v1014 = vadd.f32 %v925, %v1013
        %1015 = vmatmul.bf16.gmra.mxu0 %v762
        %v1016 = vpop.f32.mrf.mxu0
        %v1017 = vadd.f32 %v928, %v1016
        %v1018 = vpop.f32.mrf.mxu0
        %v1019 = vadd.f32 %v930, %v1018
        %1020 = vmatmul.bf16.gmra.mxu0 %v765
        %v1021 = vpop.f32.mrf.mxu0
        %v1022 = vadd.f32 %v933, %v1021
        %v1023 = vpop.f32.mrf.mxu0
        %v1024 = vadd.f32 %v935, %v1023
        %1025 = vmatmul.bf16.gmra.mxu0 %v768
        %v1026 = vpop.f32.mrf.mxu0
        %v1027 = vadd.f32 %v938, %v1026
        %v1028 = vpop.f32.mrf.mxu0
        %v1029 = vadd.f32 %v940, %v1028
        %1030 = vmatmul.bf16.gmra.mxu0 %v771
        %v1031 = vpop.f32.mrf.mxu0
        %v1032 = vadd.f32 %v943, %v1031
        %v1033 = vpop.f32.mrf.mxu0
        %v1034 = vadd.f32 %v945, %v1033
        %1035 = vmatmul.bf16.gmra.mxu0 %v774
        %v1036 = vpop.f32.mrf.mxu0
        %v1037 = vadd.f32 %v948, %v1036
        %v1038 = vpop.f32.mrf.mxu0
        %v1039 = vadd.f32 %v950, %v1038
        %1040 = vmatmul.bf16.gmra.mxu0 %v777
        %v1041 = vpop.f32.mrf.mxu0
        %v1042 = vadd.f32 %v953, %v1041
        %v1043 = vpop.f32.mrf.mxu0
        %v1044 = vadd.f32 %v955, %v1043
        %1045 = vmatmul.bf16.gmra.mxu0 %v780
        %v1046 = vpop.f32.mrf.mxu0
        %v1047 = vadd.f32 %v958, %v1046
        %v1048 = vpop.f32.mrf.mxu0
        %v1049 = vadd.f32 %v960, %v1048
        %1050 = vmatmul.bf16.gmra.mxu0 %v783
        %v1051 = vpop.f32.mrf.mxu0
        %v1052 = vadd.f32 %v963, %v1051
        %v1053 = vpop.f32.mrf.mxu0
        %v1054 = vadd.f32 %v965, %v1053
        %1055 = vdwg.mxu0
        %v1056 = vlaneseq
        %v1057 = vand.u32 %v1056, 127
        %vm1058 = vcmp.lt.s32.totalorder %v1057, 96
        %v1059 = vsel %vm1058, 0.5, 1.0
        %v1060 = vmul.f32 %v977, %v1059
        %v1061 = vmul.f32 %v979, %v1059
        %v1062 = vmul.f32 %v982, %v1059
        %v1063 = vmul.f32 %v984, %v1059
        %v1064 = vmul.f32 %v987, %v1059
        %v1065 = vmul.f32 %v989, %v1059
        %v1066 = vmul.f32 %v992, %v1059
        %v1067 = vmul.f32 %v994, %v1059
        %v1068 = vmul.f32 %v997, %v1059
        %v1069 = vmul.f32 %v999, %v1059
        %v1070 = vmul.f32 %v1002, %v1059
        %v1071 = vmul.f32 %v1004, %v1059
        %v1072 = vmul.f32 %v1007, %v1059
        %v1073 = vmul.f32 %v1009, %v1059
        %v1074 = vmul.f32 %v1012, %v1059
        %v1075 = vmul.f32 %v1014, %v1059
        %v1076 = vmul.f32 %v1017, %v1059
        %v1077 = vmul.f32 %v1019, %v1059
        %v1078 = vmul.f32 %v1022, %v1059
        %v1079 = vmul.f32 %v1024, %v1059
        %v1080 = vmul.f32 %v1027, %v1059
        %v1081 = vmul.f32 %v1029, %v1059
        %v1082 = vmul.f32 %v1032, %v1059
        %v1083 = vmul.f32 %v1034, %v1059
        %v1084 = vmul.f32 %v1037, %v1059
        %v1085 = vmul.f32 %v1039, %v1059
        %v1086 = vmul.f32 %v1042, %v1059
        %v1087 = vmul.f32 %v1044, %v1059
        %v1088 = vmul.f32 %v1047, %v1059
        %v1089 = vmul.f32 %v1049, %v1059
        %v1090 = vmul.f32 %v1052, %v1059
        %v1091 = vmul.f32 %v1054, %v1059
        %v1092 = vtanh.pop %v1060
        %v1093 = vtanh.pop %v1061
        %v1094 = vtanh.pop %v1062
        %v1095 = vtanh.pop %v1063
        %v1096 = vtanh.pop %v1064
        %v1097 = vtanh.pop %v1065
        %v1098 = vtanh.pop %v1066
        %v1099 = vtanh.pop %v1067
        %v1100 = vtanh.pop %v1068
        %v1101 = vtanh.pop %v1069
        %v1102 = vtanh.pop %v1070
        %v1103 = vtanh.pop %v1071
        %v1104 = vtanh.pop %v1072
        %v1105 = vtanh.pop %v1073
        %v1106 = vtanh.pop %v1074
        %v1107 = vtanh.pop %v1075
        %v1108 = vtanh.pop %v1076
        %v1109 = vtanh.pop %v1077
        %v1110 = vtanh.pop %v1078
        %v1111 = vtanh.pop %v1079
        %v1112 = vtanh.pop %v1080
        %v1113 = vtanh.pop %v1081
        %v1114 = vtanh.pop %v1082
        %v1115 = vtanh.pop %v1083
        %v1116 = vtanh.pop %v1084
        %v1117 = vtanh.pop %v1085
        %v1118 = vtanh.pop %v1086
        %v1119 = vtanh.pop %v1087
        %v1120 = vtanh.pop %v1088
        %v1121 = vtanh.pop %v1089
        %v1122 = vtanh.pop %v1090
        %v1123 = vtanh.pop %v1091
        %v1124 = vmul.f32 %v1092, %v1059
        %v1125 = vmul.f32 %v1093, %v1059
        %v1126 = vmul.f32 %v1094, %v1059
        %v1127 = vmul.f32 %v1095, %v1059
        %v1128 = vmul.f32 %v1096, %v1059
        %v1129 = vmul.f32 %v1097, %v1059
        %v1130 = vmul.f32 %v1098, %v1059
        %v1131 = vmul.f32 %v1099, %v1059
        %v1132 = vmul.f32 %v1100, %v1059
        %v1133 = vmul.f32 %v1101, %v1059
        %v1134 = vmul.f32 %v1102, %v1059
        %v1135 = vmul.f32 %v1103, %v1059
        %v1136 = vmul.f32 %v1104, %v1059
        %v1137 = vmul.f32 %v1105, %v1059
        %v1138 = vmul.f32 %v1106, %v1059
        %v1139 = vmul.f32 %v1107, %v1059
        %v1140 = vmul.f32 %v1108, %v1059
        %v1141 = vmul.f32 %v1109, %v1059
        %v1142 = vmul.f32 %v1110, %v1059
        %v1143 = vmul.f32 %v1111, %v1059
        %v1144 = vmul.f32 %v1112, %v1059
        %v1145 = vmul.f32 %v1113, %v1059
        %v1146 = vmul.f32 %v1114, %v1059
        %v1147 = vmul.f32 %v1115, %v1059
        %v1148 = vmul.f32 %v1116, %v1059
        %v1149 = vmul.f32 %v1117, %v1059
        %v1150 = vmul.f32 %v1118, %v1059
        %v1151 = vmul.f32 %v1119, %v1059
        %v1152 = vmul.f32 %v1120, %v1059
        %v1153 = vmul.f32 %v1121, %v1059
        %v1154 = vmul.f32 %v1122, %v1059
        %v1155 = vmul.f32 %v1123, %v1059
        %v1156 = vsel %vm1058, 0.5, 0.0
        %v1157 = vadd.f32 %v1124, %v1156
        %v1158 = vadd.f32 %v1125, %v1156
        %v1159 = vadd.f32 %v1126, %v1156
        %v1160 = vadd.f32 %v1127, %v1156
        %v1161 = vadd.f32 %v1128, %v1156
        %v1162 = vadd.f32 %v1129, %v1156
        %v1163 = vadd.f32 %v1130, %v1156
        %v1164 = vadd.f32 %v1131, %v1156
        %v1165 = vadd.f32 %v1132, %v1156
        %v1166 = vadd.f32 %v1133, %v1156
        %v1167 = vadd.f32 %v1134, %v1156
        %v1168 = vadd.f32 %v1135, %v1156
        %v1169 = vadd.f32 %v1136, %v1156
        %v1170 = vadd.f32 %v1137, %v1156
        %v1171 = vadd.f32 %v1138, %v1156
        %v1172 = vadd.f32 %v1139, %v1156
        %v1173 = vadd.f32 %v1140, %v1156
        %v1174 = vadd.f32 %v1141, %v1156
        %v1175 = vadd.f32 %v1142, %v1156
        %v1176 = vadd.f32 %v1143, %v1156
        %v1177 = vadd.f32 %v1144, %v1156
        %v1178 = vadd.f32 %v1145, %v1156
        %v1179 = vadd.f32 %v1146, %v1156
        %v1180 = vadd.f32 %v1147, %v1156
        %v1181 = vadd.f32 %v1148, %v1156
        %v1182 = vadd.f32 %v1149, %v1156
        %v1183 = vadd.f32 %v1150, %v1156
        %v1184 = vadd.f32 %v1151, %v1156
        %v1185 = vadd.f32 %v1152, %v1156
        %v1186 = vadd.f32 %v1153, %v1156
        %v1187 = vadd.f32 %v1154, %v1156
        %v1188 = vadd.f32 %v1155, %v1156
        %v1189 = vld [vmem:[%s259] sm:$0xff]
        %v1190 = vld [vmem:[%s259 + $0x8] sm:$0xff]
        %v1191 = vld [vmem:[%s259 + $0x10] sm:$0xff]
        %v1192 = vld [vmem:[%s259 + $0x18] sm:$0xff]
        %v1193 = vld [vmem:[%s259 + $0x20] sm:$0xff]
        %v1194 = vld [vmem:[%s259 + $0x28] sm:$0xff]
        %v1195 = vld [vmem:[%s259 + $0x30] sm:$0xff]
        %v1196 = vld [vmem:[%s259 + $0x38] sm:$0xff]
        %v1197 = vld [vmem:[%s259 + $0x40] sm:$0xff]
        %v1198 = vld [vmem:[%s259 + $0x48] sm:$0xff]
        %v1199 = vld [vmem:[%s259 + $0x50] sm:$0xff]
        %v1200 = vld [vmem:[%s259 + $0x58] sm:$0xff]
        %v1201 = vld [vmem:[%s259 + $0x60] sm:$0xff]
        %v1202 = vld [vmem:[%s259 + $0x68] sm:$0xff]
        %v1203 = vld [vmem:[%s259 + $0x70] sm:$0xff]
        %v1204 = vld [vmem:[%s259 + $0x78] sm:$0xff]
        %v1205 = vld [vmem:[%s259 + $0x80] sm:$0xff]
        %v1206 = vld [vmem:[%s259 + $0x88] sm:$0xff]
        %v1207 = vld [vmem:[%s259 + $0x90] sm:$0xff]
        %v1208 = vld [vmem:[%s259 + $0x98] sm:$0xff]
        %v1209 = vld [vmem:[%s259 + $0xa0] sm:$0xff]
        %v1210 = vld [vmem:[%s259 + $0xa8] sm:$0xff]
        %v1211 = vld [vmem:[%s259 + $0xb0] sm:$0xff]
        %v1212 = vld [vmem:[%s259 + $0xb8] sm:$0xff]
        %v1213 = vld [vmem:[%s259 + $0xc0] sm:$0xff]
        %v1214 = vld [vmem:[%s259 + $0xc8] sm:$0xff]
        %v1215 = vld [vmem:[%s259 + $0xd0] sm:$0xff]
        %v1216 = vld [vmem:[%s259 + $0xd8] sm:$0xff]
        %v1217 = vld [vmem:[%s259 + $0xe0] sm:$0xff]
        %v1218 = vld [vmem:[%s259 + $0xe8] sm:$0xff]
        %v1219 = vld [vmem:[%s259 + $0xf0] sm:$0xff]
        %v1220 = vld [vmem:[%s259 + $0xf8] sm:$0xff]
        %1253 = vrot.lane.b32.xlu0 %v1189, 32
        %v1254 = vpop.permute.xlu0 %1253
        %1255 = vrot.lane.b32.xlu0 %v1190, 32
        %v1256 = vpop.permute.xlu0 %1255
        %1257 = vrot.lane.b32.xlu0 %v1191, 32
        %v1258 = vpop.permute.xlu0 %1257
        %1259 = vrot.lane.b32.xlu0 %v1192, 32
        %v1260 = vpop.permute.xlu0 %1259
        %1261 = vrot.lane.b32.xlu0 %v1193, 32
        %v1262 = vpop.permute.xlu0 %1261
        %1263 = vrot.lane.b32.xlu0 %v1194, 32
        %v1264 = vpop.permute.xlu0 %1263
        %1265 = vrot.lane.b32.xlu0 %v1195, 32
        %v1266 = vpop.permute.xlu0 %1265
        %1267 = vrot.lane.b32.xlu0 %v1196, 32
        %v1268 = vpop.permute.xlu0 %1267
        %1269 = vrot.lane.b32.xlu0 %v1197, 32
        %v1270 = vpop.permute.xlu0 %1269
        %1271 = vrot.lane.b32.xlu0 %v1198, 32
        %v1272 = vpop.permute.xlu0 %1271
        %1273 = vrot.lane.b32.xlu0 %v1199, 32
        %v1274 = vpop.permute.xlu0 %1273
        %1275 = vrot.lane.b32.xlu0 %v1200, 32
        %v1276 = vpop.permute.xlu0 %1275
        %1277 = vrot.lane.b32.xlu0 %v1201, 32
        %v1278 = vpop.permute.xlu0 %1277
        %1279 = vrot.lane.b32.xlu0 %v1202, 32
        %v1280 = vpop.permute.xlu0 %1279
        %1281 = vrot.lane.b32.xlu0 %v1203, 32
        %v1282 = vpop.permute.xlu0 %1281
        %1283 = vrot.lane.b32.xlu0 %v1204, 32
        %v1284 = vpop.permute.xlu0 %1283
        %1285 = vrot.lane.b32.xlu0 %v1205, 32
        %v1286 = vpop.permute.xlu0 %1285
        %1287 = vrot.lane.b32.xlu0 %v1206, 32
        %v1288 = vpop.permute.xlu0 %1287
        %1289 = vrot.lane.b32.xlu0 %v1207, 32
        %v1290 = vpop.permute.xlu0 %1289
        %1291 = vrot.lane.b32.xlu0 %v1208, 32
        %v1292 = vpop.permute.xlu0 %1291
        %1293 = vrot.lane.b32.xlu0 %v1209, 32
        %v1294 = vpop.permute.xlu0 %1293
        %1295 = vrot.lane.b32.xlu0 %v1210, 32
        %v1296 = vpop.permute.xlu0 %1295
        %1297 = vrot.lane.b32.xlu0 %v1211, 32
        %v1298 = vpop.permute.xlu0 %1297
        %1299 = vrot.lane.b32.xlu0 %v1212, 32
        %v1300 = vpop.permute.xlu0 %1299
        %1301 = vrot.lane.b32.xlu0 %v1213, 32
        %v1302 = vpop.permute.xlu0 %1301
        %1303 = vrot.lane.b32.xlu0 %v1214, 32
        %v1304 = vpop.permute.xlu0 %1303
        %1305 = vrot.lane.b32.xlu0 %v1215, 32
        %v1306 = vpop.permute.xlu0 %1305
        %1307 = vrot.lane.b32.xlu0 %v1216, 32
        %v1308 = vpop.permute.xlu0 %1307
        %1309 = vrot.lane.b32.xlu0 %v1217, 32
        %v1310 = vpop.permute.xlu0 %1309
        %1311 = vrot.lane.b32.xlu0 %v1218, 32
        %v1312 = vpop.permute.xlu0 %1311
        %1313 = vrot.lane.b32.xlu0 %v1219, 32
        %v1314 = vpop.permute.xlu0 %1313
        %1315 = vrot.lane.b32.xlu0 %v1220, 32
        %v1316 = vpop.permute.xlu0 %1315
        %v1349 = vmul.f32 %v1157, %v1254
        %v1350 = vmul.f32 %v1158, %v1256
        %v1351 = vmul.f32 %v1159, %v1258
        %v1352 = vmul.f32 %v1160, %v1260
        %v1353 = vmul.f32 %v1161, %v1262
        %v1354 = vmul.f32 %v1162, %v1264
        %v1355 = vmul.f32 %v1163, %v1266
        %v1356 = vmul.f32 %v1164, %v1268
        %v1357 = vmul.f32 %v1165, %v1270
        %v1358 = vmul.f32 %v1166, %v1272
        %v1359 = vmul.f32 %v1167, %v1274
        %v1360 = vmul.f32 %v1168, %v1276
        %v1361 = vmul.f32 %v1169, %v1278
        %v1362 = vmul.f32 %v1170, %v1280
        %v1363 = vmul.f32 %v1171, %v1282
        %v1364 = vmul.f32 %v1172, %v1284
        %v1365 = vmul.f32 %v1173, %v1286
        %v1366 = vmul.f32 %v1174, %v1288
        %v1367 = vmul.f32 %v1175, %v1290
        %v1368 = vmul.f32 %v1176, %v1292
        %v1369 = vmul.f32 %v1177, %v1294
        %v1370 = vmul.f32 %v1178, %v1296
        %v1371 = vmul.f32 %v1179, %v1298
        %v1372 = vmul.f32 %v1180, %v1300
        %v1373 = vmul.f32 %v1181, %v1302
        %v1374 = vmul.f32 %v1182, %v1304
        %v1375 = vmul.f32 %v1183, %v1306
        %v1376 = vmul.f32 %v1184, %v1308
        %v1377 = vmul.f32 %v1185, %v1310
        %v1378 = vmul.f32 %v1186, %v1312
        %v1379 = vmul.f32 %v1187, %v1314
        %v1380 = vmul.f32 %v1188, %v1316
        %1413 = vrot.lane.b32.xlu0 %v1157, 32
        %v1414 = vpop.permute.xlu0 %1413
        %1415 = vrot.lane.b32.xlu0 %v1158, 32
        %v1416 = vpop.permute.xlu0 %1415
        %1417 = vrot.lane.b32.xlu0 %v1159, 32
        %v1418 = vpop.permute.xlu0 %1417
        %1419 = vrot.lane.b32.xlu0 %v1160, 32
        %v1420 = vpop.permute.xlu0 %1419
        %1421 = vrot.lane.b32.xlu0 %v1161, 32
        %v1422 = vpop.permute.xlu0 %1421
        %1423 = vrot.lane.b32.xlu0 %v1162, 32
        %v1424 = vpop.permute.xlu0 %1423
        %1425 = vrot.lane.b32.xlu0 %v1163, 32
        %v1426 = vpop.permute.xlu0 %1425
        %1427 = vrot.lane.b32.xlu0 %v1164, 32
        %v1428 = vpop.permute.xlu0 %1427
        %1429 = vrot.lane.b32.xlu0 %v1165, 32
        %v1430 = vpop.permute.xlu0 %1429
        %1431 = vrot.lane.b32.xlu0 %v1166, 32
        %v1432 = vpop.permute.xlu0 %1431
        %1433 = vrot.lane.b32.xlu0 %v1167, 32
        %v1434 = vpop.permute.xlu0 %1433
        %1435 = vrot.lane.b32.xlu0 %v1168, 32
        %v1436 = vpop.permute.xlu0 %1435
        %1437 = vrot.lane.b32.xlu0 %v1169, 32
        %v1438 = vpop.permute.xlu0 %1437
        %1439 = vrot.lane.b32.xlu0 %v1170, 32
        %v1440 = vpop.permute.xlu0 %1439
        %1441 = vrot.lane.b32.xlu0 %v1171, 32
        %v1442 = vpop.permute.xlu0 %1441
        %1443 = vrot.lane.b32.xlu0 %v1172, 32
        %v1444 = vpop.permute.xlu0 %1443
        %1445 = vrot.lane.b32.xlu0 %v1173, 32
        %v1446 = vpop.permute.xlu0 %1445
        %1447 = vrot.lane.b32.xlu0 %v1174, 32
        %v1448 = vpop.permute.xlu0 %1447
        %1449 = vrot.lane.b32.xlu0 %v1175, 32
        %v1450 = vpop.permute.xlu0 %1449
        %1451 = vrot.lane.b32.xlu0 %v1176, 32
        %v1452 = vpop.permute.xlu0 %1451
        %1453 = vrot.lane.b32.xlu0 %v1177, 32
        %v1454 = vpop.permute.xlu0 %1453
        %1455 = vrot.lane.b32.xlu0 %v1178, 32
        %v1456 = vpop.permute.xlu0 %1455
        %1457 = vrot.lane.b32.xlu0 %v1179, 32
        %v1458 = vpop.permute.xlu0 %1457
        %1459 = vrot.lane.b32.xlu0 %v1180, 32
        %v1460 = vpop.permute.xlu0 %1459
        %1461 = vrot.lane.b32.xlu0 %v1181, 32
        %v1462 = vpop.permute.xlu0 %1461
        %1463 = vrot.lane.b32.xlu0 %v1182, 32
        %v1464 = vpop.permute.xlu0 %1463
        %1465 = vrot.lane.b32.xlu0 %v1183, 32
        %v1466 = vpop.permute.xlu0 %1465
        %1467 = vrot.lane.b32.xlu0 %v1184, 32
        %v1468 = vpop.permute.xlu0 %1467
        %1469 = vrot.lane.b32.xlu0 %v1185, 32
        %v1470 = vpop.permute.xlu0 %1469
        %1471 = vrot.lane.b32.xlu0 %v1186, 32
        %v1472 = vpop.permute.xlu0 %1471
        %1473 = vrot.lane.b32.xlu0 %v1187, 32
        %v1474 = vpop.permute.xlu0 %1473
        %1475 = vrot.lane.b32.xlu0 %v1188, 32
        %v1476 = vpop.permute.xlu0 %1475
        %v1509 = vmul.f32 %v1157, %v1414
        %v1510 = vmul.f32 %v1158, %v1416
        %v1511 = vmul.f32 %v1159, %v1418
        %v1512 = vmul.f32 %v1160, %v1420
        %v1513 = vmul.f32 %v1161, %v1422
        %v1514 = vmul.f32 %v1162, %v1424
        %v1515 = vmul.f32 %v1163, %v1426
        %v1516 = vmul.f32 %v1164, %v1428
        %v1517 = vmul.f32 %v1165, %v1430
        %v1518 = vmul.f32 %v1166, %v1432
        %v1519 = vmul.f32 %v1167, %v1434
        %v1520 = vmul.f32 %v1168, %v1436
        %v1521 = vmul.f32 %v1169, %v1438
        %v1522 = vmul.f32 %v1170, %v1440
        %v1523 = vmul.f32 %v1171, %v1442
        %v1524 = vmul.f32 %v1172, %v1444
        %v1525 = vmul.f32 %v1173, %v1446
        %v1526 = vmul.f32 %v1174, %v1448
        %v1527 = vmul.f32 %v1175, %v1450
        %v1528 = vmul.f32 %v1176, %v1452
        %v1529 = vmul.f32 %v1177, %v1454
        %v1530 = vmul.f32 %v1178, %v1456
        %v1531 = vmul.f32 %v1179, %v1458
        %v1532 = vmul.f32 %v1180, %v1460
        %v1533 = vmul.f32 %v1181, %v1462
        %v1534 = vmul.f32 %v1182, %v1464
        %v1535 = vmul.f32 %v1183, %v1466
        %v1536 = vmul.f32 %v1184, %v1468
        %v1537 = vmul.f32 %v1185, %v1470
        %v1538 = vmul.f32 %v1186, %v1472
        %v1539 = vmul.f32 %v1187, %v1474
        %v1540 = vmul.f32 %v1188, %v1476
        %1573 = vrot.lane.b32.xlu0 %v1509, 32
        %v1574 = vpop.permute.xlu0 %1573
        %1575 = vrot.lane.b32.xlu0 %v1510, 32
        %v1576 = vpop.permute.xlu0 %1575
        %1577 = vrot.lane.b32.xlu0 %v1511, 32
        %v1578 = vpop.permute.xlu0 %1577
        %1579 = vrot.lane.b32.xlu0 %v1512, 32
        %v1580 = vpop.permute.xlu0 %1579
        %1581 = vrot.lane.b32.xlu0 %v1513, 32
        %v1582 = vpop.permute.xlu0 %1581
        %1583 = vrot.lane.b32.xlu0 %v1514, 32
        %v1584 = vpop.permute.xlu0 %1583
        %1585 = vrot.lane.b32.xlu0 %v1515, 32
        %v1586 = vpop.permute.xlu0 %1585
        %1587 = vrot.lane.b32.xlu0 %v1516, 32
        %v1588 = vpop.permute.xlu0 %1587
        %1589 = vrot.lane.b32.xlu0 %v1517, 32
        %v1590 = vpop.permute.xlu0 %1589
        %1591 = vrot.lane.b32.xlu0 %v1518, 32
        %v1592 = vpop.permute.xlu0 %1591
        %1593 = vrot.lane.b32.xlu0 %v1519, 32
        %v1594 = vpop.permute.xlu0 %1593
        %1595 = vrot.lane.b32.xlu0 %v1520, 32
        %v1596 = vpop.permute.xlu0 %1595
        %1597 = vrot.lane.b32.xlu0 %v1521, 32
        %v1598 = vpop.permute.xlu0 %1597
        %1599 = vrot.lane.b32.xlu0 %v1522, 32
        %v1600 = vpop.permute.xlu0 %1599
        %1601 = vrot.lane.b32.xlu0 %v1523, 32
        %v1602 = vpop.permute.xlu0 %1601
        %1603 = vrot.lane.b32.xlu0 %v1524, 32
        %v1604 = vpop.permute.xlu0 %1603
        %1605 = vrot.lane.b32.xlu0 %v1525, 32
        %v1606 = vpop.permute.xlu0 %1605
        %1607 = vrot.lane.b32.xlu0 %v1526, 32
        %v1608 = vpop.permute.xlu0 %1607
        %1609 = vrot.lane.b32.xlu0 %v1527, 32
        %v1610 = vpop.permute.xlu0 %1609
        %1611 = vrot.lane.b32.xlu0 %v1528, 32
        %v1612 = vpop.permute.xlu0 %1611
        %1613 = vrot.lane.b32.xlu0 %v1529, 32
        %v1614 = vpop.permute.xlu0 %1613
        %1615 = vrot.lane.b32.xlu0 %v1530, 32
        %v1616 = vpop.permute.xlu0 %1615
        %1617 = vrot.lane.b32.xlu0 %v1531, 32
        %v1618 = vpop.permute.xlu0 %1617
        %1619 = vrot.lane.b32.xlu0 %v1532, 32
        %v1620 = vpop.permute.xlu0 %1619
        %1621 = vrot.lane.b32.xlu0 %v1533, 32
        %v1622 = vpop.permute.xlu0 %1621
        %1623 = vrot.lane.b32.xlu0 %v1534, 32
        %v1624 = vpop.permute.xlu0 %1623
        %1625 = vrot.lane.b32.xlu0 %v1535, 32
        %v1626 = vpop.permute.xlu0 %1625
        %1627 = vrot.lane.b32.xlu0 %v1536, 32
        %v1628 = vpop.permute.xlu0 %1627
        %1629 = vrot.lane.b32.xlu0 %v1537, 32
        %v1630 = vpop.permute.xlu0 %1629
        %1631 = vrot.lane.b32.xlu0 %v1538, 32
        %v1632 = vpop.permute.xlu0 %1631
        %1633 = vrot.lane.b32.xlu0 %v1539, 32
        %v1634 = vpop.permute.xlu0 %1633
        %1635 = vrot.lane.b32.xlu0 %v1540, 32
        %v1636 = vpop.permute.xlu0 %1635
        %v1669 = vadd.f32 %v1349, %v1574
        %v1670 = vadd.f32 %v1350, %v1576
        %v1671 = vadd.f32 %v1351, %v1578
        %v1672 = vadd.f32 %v1352, %v1580
        %v1673 = vadd.f32 %v1353, %v1582
        %v1674 = vadd.f32 %v1354, %v1584
        %v1675 = vadd.f32 %v1355, %v1586
        %v1676 = vadd.f32 %v1356, %v1588
        %v1677 = vadd.f32 %v1357, %v1590
        %v1678 = vadd.f32 %v1358, %v1592
        %v1679 = vadd.f32 %v1359, %v1594
        %v1680 = vadd.f32 %v1360, %v1596
        %v1681 = vadd.f32 %v1361, %v1598
        %v1682 = vadd.f32 %v1362, %v1600
        %v1683 = vadd.f32 %v1363, %v1602
        %v1684 = vadd.f32 %v1364, %v1604
        %v1685 = vadd.f32 %v1365, %v1606
        %v1686 = vadd.f32 %v1366, %v1608
        %v1687 = vadd.f32 %v1367, %v1610
        %v1688 = vadd.f32 %v1368, %v1612
        %v1689 = vadd.f32 %v1369, %v1614
        %v1690 = vadd.f32 %v1370, %v1616
        %v1691 = vadd.f32 %v1371, %v1618
        %v1692 = vadd.f32 %v1372, %v1620
        %v1693 = vadd.f32 %v1373, %v1622
        %v1694 = vadd.f32 %v1374, %v1624
        %v1695 = vadd.f32 %v1375, %v1626
        %v1696 = vadd.f32 %v1376, %v1628
        %v1697 = vadd.f32 %v1377, %v1630
        %v1698 = vadd.f32 %v1378, %v1632
        %v1699 = vadd.f32 %v1379, %v1634
        %v1700 = vadd.f32 %v1380, %v1636
        %v1701 = vtanh.pop %v1669
        %v1702 = vtanh.pop %v1670
        %v1703 = vtanh.pop %v1671
        %v1704 = vtanh.pop %v1672
        %v1705 = vtanh.pop %v1673
        %v1706 = vtanh.pop %v1674
        %v1707 = vtanh.pop %v1675
        %v1708 = vtanh.pop %v1676
        %v1709 = vtanh.pop %v1677
        %v1710 = vtanh.pop %v1678
        %v1711 = vtanh.pop %v1679
        %v1712 = vtanh.pop %v1680
        %v1713 = vtanh.pop %v1681
        %v1714 = vtanh.pop %v1682
        %v1715 = vtanh.pop %v1683
        %v1716 = vtanh.pop %v1684
        %v1717 = vtanh.pop %v1685
        %v1718 = vtanh.pop %v1686
        %v1719 = vtanh.pop %v1687
        %v1720 = vtanh.pop %v1688
        %v1721 = vtanh.pop %v1689
        %v1722 = vtanh.pop %v1690
        %v1723 = vtanh.pop %v1691
        %v1724 = vtanh.pop %v1692
        %v1725 = vtanh.pop %v1693
        %v1726 = vtanh.pop %v1694
        %v1727 = vtanh.pop %v1695
        %v1728 = vtanh.pop %v1696
        %v1729 = vtanh.pop %v1697
        %v1730 = vtanh.pop %v1698
        %v1731 = vtanh.pop %v1699
        %v1732 = vtanh.pop %v1700
        %1765 = vrot.lane.b32.xlu0 %v1701, 32
        %v1766 = vpop.permute.xlu0 %1765
        %1767 = vrot.lane.b32.xlu0 %v1702, 32
        %v1768 = vpop.permute.xlu0 %1767
        %1769 = vrot.lane.b32.xlu0 %v1703, 32
        %v1770 = vpop.permute.xlu0 %1769
        %1771 = vrot.lane.b32.xlu0 %v1704, 32
        %v1772 = vpop.permute.xlu0 %1771
        %1773 = vrot.lane.b32.xlu0 %v1705, 32
        %v1774 = vpop.permute.xlu0 %1773
        %1775 = vrot.lane.b32.xlu0 %v1706, 32
        %v1776 = vpop.permute.xlu0 %1775
        %1777 = vrot.lane.b32.xlu0 %v1707, 32
        %v1778 = vpop.permute.xlu0 %1777
        %1779 = vrot.lane.b32.xlu0 %v1708, 32
        %v1780 = vpop.permute.xlu0 %1779
        %1781 = vrot.lane.b32.xlu0 %v1709, 32
        %v1782 = vpop.permute.xlu0 %1781
        %1783 = vrot.lane.b32.xlu0 %v1710, 32
        %v1784 = vpop.permute.xlu0 %1783
        %1785 = vrot.lane.b32.xlu0 %v1711, 32
        %v1786 = vpop.permute.xlu0 %1785
        %1787 = vrot.lane.b32.xlu0 %v1712, 32
        %v1788 = vpop.permute.xlu0 %1787
        %1789 = vrot.lane.b32.xlu0 %v1713, 32
        %v1790 = vpop.permute.xlu0 %1789
        %1791 = vrot.lane.b32.xlu0 %v1714, 32
        %v1792 = vpop.permute.xlu0 %1791
        %1793 = vrot.lane.b32.xlu0 %v1715, 32
        %v1794 = vpop.permute.xlu0 %1793
        %1795 = vrot.lane.b32.xlu0 %v1716, 32
        %v1796 = vpop.permute.xlu0 %1795
        %1797 = vrot.lane.b32.xlu0 %v1717, 32
        %v1798 = vpop.permute.xlu0 %1797
        %1799 = vrot.lane.b32.xlu0 %v1718, 32
        %v1800 = vpop.permute.xlu0 %1799
        %1801 = vrot.lane.b32.xlu0 %v1719, 32
        %v1802 = vpop.permute.xlu0 %1801
        %1803 = vrot.lane.b32.xlu0 %v1720, 32
        %v1804 = vpop.permute.xlu0 %1803
        %1805 = vrot.lane.b32.xlu0 %v1721, 32
        %v1806 = vpop.permute.xlu0 %1805
        %1807 = vrot.lane.b32.xlu0 %v1722, 32
        %v1808 = vpop.permute.xlu0 %1807
        %1809 = vrot.lane.b32.xlu0 %v1723, 32
        %v1810 = vpop.permute.xlu0 %1809
        %1811 = vrot.lane.b32.xlu0 %v1724, 32
        %v1812 = vpop.permute.xlu0 %1811
        %1813 = vrot.lane.b32.xlu0 %v1725, 32
        %v1814 = vpop.permute.xlu0 %1813
        %1815 = vrot.lane.b32.xlu0 %v1726, 32
        %v1816 = vpop.permute.xlu0 %1815
        %1817 = vrot.lane.b32.xlu0 %v1727, 32
        %v1818 = vpop.permute.xlu0 %1817
        %1819 = vrot.lane.b32.xlu0 %v1728, 32
        %v1820 = vpop.permute.xlu0 %1819
        %1821 = vrot.lane.b32.xlu0 %v1729, 32
        %v1822 = vpop.permute.xlu0 %1821
        %1823 = vrot.lane.b32.xlu0 %v1730, 32
        %v1824 = vpop.permute.xlu0 %1823
        %1825 = vrot.lane.b32.xlu0 %v1731, 32
        %v1826 = vpop.permute.xlu0 %1825
        %1827 = vrot.lane.b32.xlu0 %v1732, 32
        %v1828 = vpop.permute.xlu0 %1827
        %v1861 = vmul.f32 %v1157, %v1766
        %v1862 = vmul.f32 %v1158, %v1768
        %v1863 = vmul.f32 %v1159, %v1770
        %v1864 = vmul.f32 %v1160, %v1772
        %v1865 = vmul.f32 %v1161, %v1774
        %v1866 = vmul.f32 %v1162, %v1776
        %v1867 = vmul.f32 %v1163, %v1778
        %v1868 = vmul.f32 %v1164, %v1780
        %v1869 = vmul.f32 %v1165, %v1782
        %v1870 = vmul.f32 %v1166, %v1784
        %v1871 = vmul.f32 %v1167, %v1786
        %v1872 = vmul.f32 %v1168, %v1788
        %v1873 = vmul.f32 %v1169, %v1790
        %v1874 = vmul.f32 %v1170, %v1792
        %v1875 = vmul.f32 %v1171, %v1794
        %v1876 = vmul.f32 %v1172, %v1796
        %v1877 = vmul.f32 %v1173, %v1798
        %v1878 = vmul.f32 %v1174, %v1800
        %v1879 = vmul.f32 %v1175, %v1802
        %v1880 = vmul.f32 %v1176, %v1804
        %v1881 = vmul.f32 %v1177, %v1806
        %v1882 = vmul.f32 %v1178, %v1808
        %v1883 = vmul.f32 %v1179, %v1810
        %v1884 = vmul.f32 %v1180, %v1812
        %v1885 = vmul.f32 %v1181, %v1814
        %v1886 = vmul.f32 %v1182, %v1816
        %v1887 = vmul.f32 %v1183, %v1818
        %v1888 = vmul.f32 %v1184, %v1820
        %v1889 = vmul.f32 %v1185, %v1822
        %v1890 = vmul.f32 %v1186, %v1824
        %v1891 = vmul.f32 %v1187, %v1826
        %v1892 = vmul.f32 %v1188, %v1828
        %1925 = vrot.lane.b32.xlu0 %v1669, 96
        %v1926 = vpop.permute.xlu0 %1925
        %1927 = vrot.lane.b32.xlu0 %v1670, 96
        %v1928 = vpop.permute.xlu0 %1927
        %1929 = vrot.lane.b32.xlu0 %v1671, 96
        %v1930 = vpop.permute.xlu0 %1929
        %1931 = vrot.lane.b32.xlu0 %v1672, 96
        %v1932 = vpop.permute.xlu0 %1931
        %1933 = vrot.lane.b32.xlu0 %v1673, 96
        %v1934 = vpop.permute.xlu0 %1933
        %1935 = vrot.lane.b32.xlu0 %v1674, 96
        %v1936 = vpop.permute.xlu0 %1935
        %1937 = vrot.lane.b32.xlu0 %v1675, 96
        %v1938 = vpop.permute.xlu0 %1937
        %1939 = vrot.lane.b32.xlu0 %v1676, 96
        %v1940 = vpop.permute.xlu0 %1939
        %1941 = vrot.lane.b32.xlu0 %v1677, 96
        %v1942 = vpop.permute.xlu0 %1941
        %1943 = vrot.lane.b32.xlu0 %v1678, 96
        %v1944 = vpop.permute.xlu0 %1943
        %1945 = vrot.lane.b32.xlu0 %v1679, 96
        %v1946 = vpop.permute.xlu0 %1945
        %1947 = vrot.lane.b32.xlu0 %v1680, 96
        %v1948 = vpop.permute.xlu0 %1947
        %1949 = vrot.lane.b32.xlu0 %v1681, 96
        %v1950 = vpop.permute.xlu0 %1949
        %1951 = vrot.lane.b32.xlu0 %v1682, 96
        %v1952 = vpop.permute.xlu0 %1951
        %1953 = vrot.lane.b32.xlu0 %v1683, 96
        %v1954 = vpop.permute.xlu0 %1953
        %1955 = vrot.lane.b32.xlu0 %v1684, 96
        %v1956 = vpop.permute.xlu0 %1955
        %1957 = vrot.lane.b32.xlu0 %v1685, 96
        %v1958 = vpop.permute.xlu0 %1957
        %1959 = vrot.lane.b32.xlu0 %v1686, 96
        %v1960 = vpop.permute.xlu0 %1959
        %1961 = vrot.lane.b32.xlu0 %v1687, 96
        %v1962 = vpop.permute.xlu0 %1961
        %1963 = vrot.lane.b32.xlu0 %v1688, 96
        %v1964 = vpop.permute.xlu0 %1963
        %1965 = vrot.lane.b32.xlu0 %v1689, 96
        %v1966 = vpop.permute.xlu0 %1965
        %1967 = vrot.lane.b32.xlu0 %v1690, 96
        %v1968 = vpop.permute.xlu0 %1967
        %1969 = vrot.lane.b32.xlu0 %v1691, 96
        %v1970 = vpop.permute.xlu0 %1969
        %1971 = vrot.lane.b32.xlu0 %v1692, 96
        %v1972 = vpop.permute.xlu0 %1971
        %1973 = vrot.lane.b32.xlu0 %v1693, 96
        %v1974 = vpop.permute.xlu0 %1973
        %1975 = vrot.lane.b32.xlu0 %v1694, 96
        %v1976 = vpop.permute.xlu0 %1975
        %1977 = vrot.lane.b32.xlu0 %v1695, 96
        %v1978 = vpop.permute.xlu0 %1977
        %1979 = vrot.lane.b32.xlu0 %v1696, 96
        %v1980 = vpop.permute.xlu0 %1979
        %1981 = vrot.lane.b32.xlu0 %v1697, 96
        %v1982 = vpop.permute.xlu0 %1981
        %1983 = vrot.lane.b32.xlu0 %v1698, 96
        %v1984 = vpop.permute.xlu0 %1983
        %1985 = vrot.lane.b32.xlu0 %v1699, 96
        %v1986 = vpop.permute.xlu0 %1985
        %1987 = vrot.lane.b32.xlu0 %v1700, 96
        %v1988 = vpop.permute.xlu0 %1987
        %vm2021 = vcmask 261120
        %2022 = vst.msk [vmem:[%s247] sm:$0xff] %vm2021, %v1926
        %2023 = vst.msk [vmem:[%s247 + $0x8] sm:$0xff] %vm2021, %v1928
        %2024 = vst.msk [vmem:[%s247 + $0x10] sm:$0xff] %vm2021, %v1930
        %2025 = vst.msk [vmem:[%s247 + $0x18] sm:$0xff] %vm2021, %v1932
        %2026 = vst.msk [vmem:[%s247 + $0x20] sm:$0xff] %vm2021, %v1934
        %2027 = vst.msk [vmem:[%s247 + $0x28] sm:$0xff] %vm2021, %v1936
        %2028 = vst.msk [vmem:[%s247 + $0x30] sm:$0xff] %vm2021, %v1938
        %2029 = vst.msk [vmem:[%s247 + $0x38] sm:$0xff] %vm2021, %v1940
        %2030 = vst.msk [vmem:[%s247 + $0x40] sm:$0xff] %vm2021, %v1942
        %2031 = vst.msk [vmem:[%s247 + $0x48] sm:$0xff] %vm2021, %v1944
        %2032 = vst.msk [vmem:[%s247 + $0x50] sm:$0xff] %vm2021, %v1946
        %2033 = vst.msk [vmem:[%s247 + $0x58] sm:$0xff] %vm2021, %v1948
        %2034 = vst.msk [vmem:[%s247 + $0x60] sm:$0xff] %vm2021, %v1950
        %2035 = vst.msk [vmem:[%s247 + $0x68] sm:$0xff] %vm2021, %v1952
        %2036 = vst.msk [vmem:[%s247 + $0x70] sm:$0xff] %vm2021, %v1954
        %2037 = vst.msk [vmem:[%s247 + $0x78] sm:$0xff] %vm2021, %v1956
        %2038 = vst.msk [vmem:[%s247 + $0x80] sm:$0xff] %vm2021, %v1958
        %2039 = vst.msk [vmem:[%s247 + $0x88] sm:$0xff] %vm2021, %v1960
        %2040 = vst.msk [vmem:[%s247 + $0x90] sm:$0xff] %vm2021, %v1962
        %2041 = vst.msk [vmem:[%s247 + $0x98] sm:$0xff] %vm2021, %v1964
        %2042 = vst.msk [vmem:[%s247 + $0xa0] sm:$0xff] %vm2021, %v1966
        %2043 = vst.msk [vmem:[%s247 + $0xa8] sm:$0xff] %vm2021, %v1968
        %2044 = vst.msk [vmem:[%s247 + $0xb0] sm:$0xff] %vm2021, %v1970
        %2045 = vst.msk [vmem:[%s247 + $0xb8] sm:$0xff] %vm2021, %v1972
        %2046 = vst.msk [vmem:[%s247 + $0xc0] sm:$0xff] %vm2021, %v1974
        %2047 = vst.msk [vmem:[%s247 + $0xc8] sm:$0xff] %vm2021, %v1976
        %2048 = vst.msk [vmem:[%s247 + $0xd0] sm:$0xff] %vm2021, %v1978
        %2049 = vst.msk [vmem:[%s247 + $0xd8] sm:$0xff] %vm2021, %v1980
        %2050 = vst.msk [vmem:[%s247 + $0xe0] sm:$0xff] %vm2021, %v1982
        %2051 = vst.msk [vmem:[%s247 + $0xe8] sm:$0xff] %vm2021, %v1984
        %2052 = vst.msk [vmem:[%s247 + $0xf0] sm:$0xff] %vm2021, %v1986
        %2053 = vst.msk [vmem:[%s247 + $0xf8] sm:$0xff] %vm2021, %v1988
        %2086 = vrot.lane.b32.xlu0 %v1861, 64
        %v2087 = vpop.permute.xlu0 %2086
        %2088 = vrot.lane.b32.xlu0 %v1862, 64
        %v2089 = vpop.permute.xlu0 %2088
        %2090 = vrot.lane.b32.xlu0 %v1863, 64
        %v2091 = vpop.permute.xlu0 %2090
        %2092 = vrot.lane.b32.xlu0 %v1864, 64
        %v2093 = vpop.permute.xlu0 %2092
        %2094 = vrot.lane.b32.xlu0 %v1865, 64
        %v2095 = vpop.permute.xlu0 %2094
        %2096 = vrot.lane.b32.xlu0 %v1866, 64
        %v2097 = vpop.permute.xlu0 %2096
        %2098 = vrot.lane.b32.xlu0 %v1867, 64
        %v2099 = vpop.permute.xlu0 %2098
        %2100 = vrot.lane.b32.xlu0 %v1868, 64
        %v2101 = vpop.permute.xlu0 %2100
        %2102 = vrot.lane.b32.xlu0 %v1869, 64
        %v2103 = vpop.permute.xlu0 %2102
        %2104 = vrot.lane.b32.xlu0 %v1870, 64
        %v2105 = vpop.permute.xlu0 %2104
        %2106 = vrot.lane.b32.xlu0 %v1871, 64
        %v2107 = vpop.permute.xlu0 %2106
        %2108 = vrot.lane.b32.xlu0 %v1872, 64
        %v2109 = vpop.permute.xlu0 %2108
        %2110 = vrot.lane.b32.xlu0 %v1873, 64
        %v2111 = vpop.permute.xlu0 %2110
        %2112 = vrot.lane.b32.xlu0 %v1874, 64
        %v2113 = vpop.permute.xlu0 %2112
        %2114 = vrot.lane.b32.xlu0 %v1875, 64
        %v2115 = vpop.permute.xlu0 %2114
        %2116 = vrot.lane.b32.xlu0 %v1876, 64
        %v2117 = vpop.permute.xlu0 %2116
        %2118 = vrot.lane.b32.xlu0 %v1877, 64
        %v2119 = vpop.permute.xlu0 %2118
        %2120 = vrot.lane.b32.xlu0 %v1878, 64
        %v2121 = vpop.permute.xlu0 %2120
        %2122 = vrot.lane.b32.xlu0 %v1879, 64
        %v2123 = vpop.permute.xlu0 %2122
        %2124 = vrot.lane.b32.xlu0 %v1880, 64
        %v2125 = vpop.permute.xlu0 %2124
        %2126 = vrot.lane.b32.xlu0 %v1881, 64
        %v2127 = vpop.permute.xlu0 %2126
        %2128 = vrot.lane.b32.xlu0 %v1882, 64
        %v2129 = vpop.permute.xlu0 %2128
        %2130 = vrot.lane.b32.xlu0 %v1883, 64
        %v2131 = vpop.permute.xlu0 %2130
        %2132 = vrot.lane.b32.xlu0 %v1884, 64
        %v2133 = vpop.permute.xlu0 %2132
        %2134 = vrot.lane.b32.xlu0 %v1885, 64
        %v2135 = vpop.permute.xlu0 %2134
        %2136 = vrot.lane.b32.xlu0 %v1886, 64
        %v2137 = vpop.permute.xlu0 %2136
        %2138 = vrot.lane.b32.xlu0 %v1887, 64
        %v2139 = vpop.permute.xlu0 %2138
        %2140 = vrot.lane.b32.xlu0 %v1888, 64
        %v2141 = vpop.permute.xlu0 %2140
        %2142 = vrot.lane.b32.xlu0 %v1889, 64
        %v2143 = vpop.permute.xlu0 %2142
        %2144 = vrot.lane.b32.xlu0 %v1890, 64
        %v2145 = vpop.permute.xlu0 %2144
        %2146 = vrot.lane.b32.xlu0 %v1891, 64
        %v2147 = vpop.permute.xlu0 %2146
        %2148 = vrot.lane.b32.xlu0 %v1892, 64
        %v2149 = vpop.permute.xlu0 %2148
        %2182 = vst.msk [vmem:[%s240] sm:$0xff] %vm2021, %v2087
        %2183 = vst.msk [vmem:[%s240 + $0x8] sm:$0xff] %vm2021, %v2089
        %2184 = vst.msk [vmem:[%s240 + $0x10] sm:$0xff] %vm2021, %v2091
        %2185 = vst.msk [vmem:[%s240 + $0x18] sm:$0xff] %vm2021, %v2093
        %2186 = vst.msk [vmem:[%s240 + $0x20] sm:$0xff] %vm2021, %v2095
        %2187 = vst.msk [vmem:[%s240 + $0x28] sm:$0xff] %vm2021, %v2097
        %2188 = vst.msk [vmem:[%s240 + $0x30] sm:$0xff] %vm2021, %v2099
        %2189 = vst.msk [vmem:[%s240 + $0x38] sm:$0xff] %vm2021, %v2101
        %2190 = vst.msk [vmem:[%s240 + $0x40] sm:$0xff] %vm2021, %v2103
        %2191 = vst.msk [vmem:[%s240 + $0x48] sm:$0xff] %vm2021, %v2105
        %2192 = vst.msk [vmem:[%s240 + $0x50] sm:$0xff] %vm2021, %v2107
        %2193 = vst.msk [vmem:[%s240 + $0x58] sm:$0xff] %vm2021, %v2109
        %2194 = vst.msk [vmem:[%s240 + $0x60] sm:$0xff] %vm2021, %v2111
        %2195 = vst.msk [vmem:[%s240 + $0x68] sm:$0xff] %vm2021, %v2113
        %2196 = vst.msk [vmem:[%s240 + $0x70] sm:$0xff] %vm2021, %v2115
        %2197 = vst.msk [vmem:[%s240 + $0x78] sm:$0xff] %vm2021, %v2117
        %2198 = vst.msk [vmem:[%s240 + $0x80] sm:$0xff] %vm2021, %v2119
        %2199 = vst.msk [vmem:[%s240 + $0x88] sm:$0xff] %vm2021, %v2121
        %2200 = vst.msk [vmem:[%s240 + $0x90] sm:$0xff] %vm2021, %v2123
        %2201 = vst.msk [vmem:[%s240 + $0x98] sm:$0xff] %vm2021, %v2125
        %2202 = vst.msk [vmem:[%s240 + $0xa0] sm:$0xff] %vm2021, %v2127
        %2203 = vst.msk [vmem:[%s240 + $0xa8] sm:$0xff] %vm2021, %v2129
        %2204 = vst.msk [vmem:[%s240 + $0xb0] sm:$0xff] %vm2021, %v2131
        %2205 = vst.msk [vmem:[%s240 + $0xb8] sm:$0xff] %vm2021, %v2133
        %2206 = vst.msk [vmem:[%s240 + $0xc0] sm:$0xff] %vm2021, %v2135
        %2207 = vst.msk [vmem:[%s240 + $0xc8] sm:$0xff] %vm2021, %v2137
        %2208 = vst.msk [vmem:[%s240 + $0xd0] sm:$0xff] %vm2021, %v2139
        %2209 = vst.msk [vmem:[%s240 + $0xd8] sm:$0xff] %vm2021, %v2141
        %2210 = vst.msk [vmem:[%s240 + $0xe0] sm:$0xff] %vm2021, %v2143
        %2211 = vst.msk [vmem:[%s240 + $0xe8] sm:$0xff] %vm2021, %v2145
        %2212 = vst.msk [vmem:[%s240 + $0xf0] sm:$0xff] %vm2021, %v2147
        %2213 = vst.msk [vmem:[%s240 + $0xf8] sm:$0xff] %vm2021, %v2149
        %s2214 = sand.u32 %s125, 1
        %s2215 = scalar_lea.sflag [#allocation3], %s2214
        %s2216 = sand.u32 %s125, 1
        %s2217 = smul.addr %s2216, 256
        %s2218 = scalar_lea.vmem [#allocation2], %s2217
        %s2219 = sand.u32 %s151, 1
        %s2220 = scalar_lea.sflag [#allocation5], %s2219
        %s2221 = sand.u32 %s151, 1
        %s2222 = smul.addr %s2221, 256
        %s2223 = scalar_lea.vmem [#allocation4], %s2222
        // Predicated region
        $region37: #{convlstm_cell_forward.1} parent=35 // pred_check
          %p2224 = pneg %p135
        $region38: #{convlstm_cell_forward.1} parent=35 // pred_check_branch
          %2226 = sbr.rel (%p2224) target = $region40
        $region39: #{convlstm_cell_forward.1} parent=35 // pred_region
          %s2227 = smul.u32 32, %s23
          %2229 = vsyncadd %s2215, 0
          %s2230 = smul.addr %s2227, 8
          %s2231 = scalar_lea.hbm %s4, %s2230
          %s2232 = sshll.u32 %s2218, 4
          %s2233 = int_to_ptr.vmem [resolvable:$true] %s2232
          %s2234 = sshll.u32 %s2231, 4
          %s2235 = int_to_ptr.hbm [resolvable:$true] %s2234
          %2240 = dma.vmem_to_hbm [thread:$0]  %s2233, 4096, %s2235, %s2215, 128, 128, 8
        $region40: #{convlstm_cell_forward.1} parent=35 // pred_fallthru
          _
        // Predicated region
        $region41: #{convlstm_cell_forward.1} parent=35 // pred_check
          %p2241 = pneg %p161
        $region42: #{convlstm_cell_forward.1} parent=35 // pred_check_branch
          %2243 = sbr.rel (%p2241) target = $region44
        $region43: #{convlstm_cell_forward.1} parent=35 // pred_region
          %s2244 = smul.u32 32, %s23
          %2246 = vsyncadd %s2220, 0
          %s2247 = smul.addr %s2244, 8
          %s2248 = scalar_lea.hbm %s5, %s2247
          %s2249 = sshll.u32 %s2223, 4
          %s2250 = int_to_ptr.vmem [resolvable:$true] %s2249
          %s2251 = sshll.u32 %s2248, 4
          %s2252 = int_to_ptr.hbm [resolvable:$true] %s2251
          %2257 = dma.vmem_to_hbm [thread:$0]  %s2250, 4096, %s2252, %s2220, 128, 128, 8
        $region44: #{convlstm_cell_forward.1} parent=35 // pred_fallthru
          _
      $region36: #{convlstm_cell_forward.1} parent=5 // pred_fallthru
        _
      %p2258 = scmp.le.s32.totalorder 2, %s18
      // Predicated region
      $region45: #{convlstm_cell_forward.1} parent=5 // pred_check
        %p2259 = pneg %p2258
      $region46: #{convlstm_cell_forward.1} parent=5 // pred_check_branch
        %2261 = sbr.rel (%p2259) target = $region48
      $region47: #{convlstm_cell_forward.1} parent=5 // pred_region
        %s2262 = ssub.s32 %s18, 2
        // Predicated region
        $region49: #{convlstm_cell_forward.1} parent=47 // pred_check
          %p2263 = pneg %p141
        $region50: #{convlstm_cell_forward.1} parent=47 // pred_check_branch
          %2265 = sbr.rel (%p2263) target = $region52
        $region51: #{convlstm_cell_forward.1} parent=47 // pred_region
          %s2266 = sand.u32 %s126, 1
          %s2267 = scalar_lea.sflag [#allocation3], %s2266
          %s2268 = sand.u32 %s126, 1
          %s2269 = smul.addr %s2268, 256
          %s2270 = scalar_lea.vmem [#allocation2], %s2269
          %2272 = dma.done %s2267, 4096
        $region52: #{convlstm_cell_forward.1} parent=47 // pred_fallthru
          _
        // Predicated region
        $region53: #{convlstm_cell_forward.1} parent=47 // pred_check
          %p2273 = pneg %p167
        $region54: #{convlstm_cell_forward.1} parent=47 // pred_check_branch
          %2275 = sbr.rel (%p2273) target = $region56
        $region55: #{convlstm_cell_forward.1} parent=47 // pred_region
          %s2276 = sand.u32 %s152, 1
          %s2277 = scalar_lea.sflag [#allocation5], %s2276
          %s2278 = sand.u32 %s152, 1
          %s2279 = smul.addr %s2278, 256
          %s2280 = scalar_lea.vmem [#allocation4], %s2279
          %2282 = dma.done %s2277, 4096
        $region56: #{convlstm_cell_forward.1} parent=47 // pred_fallthru
          _
      $region48: #{convlstm_cell_forward.1} parent=5 // pred_fallthru
        _
    $region6: #{convlstm_cell_forward.1} parent=1 // loop_footer
      %s22 = sadd.s32 1, %s18
    $region7: #{convlstm_cell_forward.1} parent=1 // loop_footer_branch
      %17 = sbr.rel target = $region3
    $region8: #{convlstm_cell_forward.1} parent=1 // loop_exit
      _
    %2283 = vsyncpa [#allocation3], 1
    %s2284 = scalar_lea.sflag [#allocation3], 1
    %2285 = vsyncpa %s2284, 1
    %2286 = vsyncpa [#allocation5], 1
    %s2287 = scalar_lea.sflag [#allocation5], 1
    %2288 = vsyncpa %s2287, 1

</llo_original>
